<compile_context>
chip_gen: v7x
topology: tpu7x:2x2x1
jax: 0.10.0
libtpu: 0.0.40
codegen_flags: <defaults>
</compile_context>

<pallas_src>
import functools

import jax
import jax.numpy as jnp
from jax.experimental import pallas as pl
from jax.experimental.pallas import tpu as pltpu

C_IN = 768
C_HID = 96
C_HID_PAD = 128   # hidden channels zero-padded up to one full lane width
C_OUT = 256
LANE = 128


def _update_kernel(x_ref, x0_ref, w1_ref, b1_ref, w2_ref, b2_ref, o_ref):
    # x_ref:  (768, ts)      one lane-dense spatial tile (C on sublanes)
    # x0_ref: (co_blk, ts)   residual tile
    # w1_ref: (128, 768)     conv1 weight, hidden zero-padded 96 -> 128
    # b1_ref: (128, 1)
    # w2_ref: (co_blk, 128)  conv2 weight slab, hidden zero-padded 96 -> 128
    # b2_ref: (co_blk, 1)
    # o_ref:  (co_blk, ts)
    #
    # bf16 MXU operands, f32 accumulation; bias add / ReLU / residual in f32.
    x_bf = x_ref[...].astype(jnp.bfloat16)
    w1_bf = w1_ref[...].astype(jnp.bfloat16)
    h = jnp.dot(w1_bf, x_bf, preferred_element_type=jnp.float32)
    h = jnp.maximum(h + b1_ref[...], 0.0)
    w2_bf = w2_ref[...].astype(jnp.bfloat16)
    y = jnp.dot(w2_bf, h.astype(jnp.bfloat16), preferred_element_type=jnp.float32)
    o_ref[...] = (y + b2_ref[...] + x0_ref[...]).astype(o_ref.dtype)


def _round_up(v, m):
    return ((v + m - 1) // m) * m


def _choose_tiles(n_batch, length, max_ts):
    """Pick (tile_size, padded_length) for the lane axis.

    * Always lane-dense: padded length and tile are multiples of 128.
    * Large extents: `max_ts`-wide tiles (512 default -> safe on v5e's 16 MiB
      scoped-VMEM default, ~85% of HBM roofline, fine on v6e/v7x).
    * Single-batch moderate extents: split into two lane-dense tiles so both
      TensorCores of a v7x chip get work.
    """
    l_pad = _round_up(max(length, LANE), LANE)
    if l_pad > max_ts:
        ts = max_ts
        l_pad = _round_up(l_pad, ts)
    elif n_batch == 1 and l_pad >= 2 * LANE:
        ts = _round_up((l_pad + 1) // 2, LANE)
        l_pad = 2 * ts
    else:
        ts = l_pad
    return ts, l_pad


@functools.partial(jax.jit, static_argnames=("max_ts",))
def update_resnet256(x, x0, w1, b1, w2, b2, *, max_ts=512):
    """x: (N, 768, H, W) f32, x0: (N, 256, H, W) f32 -> (N, 256, H, W) f32."""
    N, _, H, W = x.shape
    S = H * W

    # Conv2d 1x1 weights -> matmul form; hidden dim zero-padded 96 -> 128 so
    # every vreg of h is fully dense (the zero rows/cols are a no-op).
    w1_m = jnp.pad(w1.reshape(C_HID, C_IN), ((0, C_HID_PAD - C_HID), (0, 0)))
    b1_m = jnp.pad(b1, (0, C_HID_PAD - C_HID)).reshape(C_HID_PAD, 1)
    w2_m = jnp.pad(w2.reshape(C_OUT, C_HID), ((0, 0), (0, C_HID_PAD - C_HID)))
    b2_m = b2.reshape(C_OUT, 1)

    fold_batch = S < LANE
    if fold_batch:
        # Tiny feature maps (the usual template-update case): fold batch into
        # the lane axis so tiles are lane-dense.  The small XLA transpose here
        # is noise compared to half-empty vregs / masked stores inside.
        L = N * S
        x_m = x.reshape(N, C_IN, S).transpose(1, 0, 2).reshape(1, C_IN, L)
        x0_m = x0.reshape(N, C_OUT, S).transpose(1, 0, 2).reshape(1, C_OUT, L)
        nb = 1
    else:
        # NCHW kept native: (N, C, H, W) -> (N, C, H*W) is a free reshape.
        L = S
        x_m = x.reshape(N, C_IN, S)
        x0_m = x0.reshape(N, C_OUT, S)
        nb = N

    ts, l_pad = _choose_tiles(nb, L, max_ts)
    if l_pad != L:
        x_m = jnp.pad(x_m, ((0, 0), (0, 0), (0, l_pad - L)))
        x0_m = jnp.pad(x0_m, ((0, 0), (0, 0), (0, l_pad - L)))

    n_s = l_pad // ts
    # If the grid would be a single step, split C_OUT into two 128-row slabs so
    # both v7x TensorCores get work (x / W1 / b1 stay constant in that axis).
    n_cout = 2 if (nb == 1 and n_s == 1) else 1
    co_blk = C_OUT // n_cout

    grid = (nb, n_cout, n_s)

    cost = pl.CostEstimate(
        flops=2 * nb * l_pad * (n_cout * C_IN * C_HID_PAD + C_HID_PAD * C_OUT),
        transcendentals=0,
        bytes_accessed=4 * (nb * l_pad * (C_IN + 2 * C_OUT)
                            + C_HID_PAD * (C_IN + C_OUT + 1) + C_OUT),
    )

    out = pl.pallas_call(
        _update_kernel,
        out_shape=jax.ShapeDtypeStruct((nb, C_OUT, l_pad), jnp.float32),
        grid_spec=pltpu.PrefetchScalarGridSpec(
            num_scalar_prefetch=0,
            grid=grid,
            in_specs=[
                pl.BlockSpec((None, C_IN, ts), lambda n, co, s: (n, 0, s)),
                pl.BlockSpec((None, co_blk, ts), lambda n, co, s: (n, co, s)),
                pl.BlockSpec((C_HID_PAD, C_IN), lambda n, co, s: (0, 0)),
                pl.BlockSpec((C_HID_PAD, 1), lambda n, co, s: (0, 0)),
                pl.BlockSpec((co_blk, C_HID_PAD), lambda n, co, s: (co, 0)),
                pl.BlockSpec((co_blk, 1), lambda n, co, s: (co, 0)),
            ],
            out_specs=pl.BlockSpec((None, co_blk, ts), lambda n, co, s: (n, co, s)),
        ),
        compiler_params=pltpu.CompilerParams(
            dimension_semantics=("parallel", "parallel", "parallel"),
        ),
        cost_estimate=cost,
    )(x_m, x0_m, w1_m, b1_m, w2_m, b2_m)

    if fold_batch:
        out = out[:, :, :L].reshape(C_OUT, N, S).transpose(1, 0, 2)
    else:
        if l_pad != L:
            out = out[:, :, :L]
    return out.reshape(N, C_OUT, H, W)


def _reference(x, x0, w1, b1, w2, b2):
    """Plain-JAX f32 reference matching the PyTorch module's semantics."""
    N, _, H, W = x.shape
    xm = x.reshape(N, C_IN, H * W)
    w1m = w1.reshape(C_HID, C_IN)
    w2m = w2.reshape(C_OUT, C_HID)
    hp = jax.lax.Precision.HIGHEST
    h = jnp.maximum(
        jnp.einsum("oc,ncs->nos", w1m, xm, precision=hp) + b1[None, :, None], 0.0)
    y = jnp.einsum("oh,nhs->nos", w2m, h, precision=hp) + b2[None, :, None]
    return y.reshape(N, C_OUT, H, W) + x0


if __name__ == "__main__":
    key = jax.random.PRNGKey(0)
    k_x, k_x0, k_w1, k_b1, k_w2, k_b2 = jax.random.split(key, 6)

    # Small spatial extent consistent with the module (full channel dims kept).
    N, H, W = 2, 8, 8
    x = jax.random.normal(k_x, (N, C_IN, H, W), dtype=jnp.float32)
    x0 = jax.random.normal(k_x0, (N, C_OUT, H, W), dtype=jnp.float32)

    # Deterministic synthetic parameters (Conv2d 1x1 weight/bias shapes).
    w1 = jax.random.normal(k_w1, (C_HID, C_IN, 1, 1), dtype=jnp.float32) * 0.02
    b1 = jax.random.normal(k_b1, (C_HID,), dtype=jnp.float32) * 0.02
    w2 = jax.random.normal(k_w2, (C_OUT, C_HID, 1, 1), dtype=jnp.float32) * 0.02
    b2 = jax.random.normal(k_b2, (C_OUT,), dtype=jnp.float32) * 0.02

    out = update_resnet256(x, x0, w1, b1, w2, b2)
    out = jax.block_until_ready(out)

    ref = _reference(x, x0, w1, b1, w2, b2)
    assert out.shape == (N, C_OUT, H, W), out.shape
    max_err = float(jnp.max(jnp.abs(out - ref)))
    # bf16 MXU operands with f32 accumulation -> tolerance loosened accordingly.
    assert jnp.allclose(out, ref, atol=2e-2, rtol=1e-2), max_err
    print("KERNEL_OK")
</pallas_src>

<mosaic_0001>
module attributes {stable_mosaic.version = 11 : i64} {
  func.func @_update_kernel(%arg0: i32, %arg1: i32, %arg2: i32, %arg3: memref<1x768x128xf32, #tpu.memory_space<vmem>>, %arg4: memref<1x128x128xf32, #tpu.memory_space<vmem>>, %arg5: memref<128x768xf32, #tpu.memory_space<vmem>>, %arg6: memref<128x1xf32, #tpu.memory_space<vmem>>, %arg7: memref<128x128xf32, #tpu.memory_space<vmem>>, %arg8: memref<128x1xf32, #tpu.memory_space<vmem>>, %arg9: memref<1x128x128xf32, #tpu.memory_space<vmem>>) attributes {dimension_semantics = [#tpu.dimension_semantics<parallel>, #tpu.dimension_semantics<parallel>, #tpu.dimension_semantics<parallel>], iteration_bounds = array<i64: 1, 2, 1>, scalar_prefetch = 0 : i64, scratch_operands = 0 : i64, tpu.core_type = #tpu.core_type<tc>, window_params = [{transform_indices = @transform_0, window_bounds = array<i64: 1, 768, 128>}, {transform_indices = @transform_1, window_bounds = array<i64: 1, 128, 128>}, {pipeline_mode = #tpu.pipeline_mode<synchronous>, transform_indices = @transform_2, window_bounds = array<i64: 128, 768>}, {pipeline_mode = #tpu.pipeline_mode<synchronous>, transform_indices = @transform_3, window_bounds = array<i64: 128, 1>}, {transform_indices = @transform_4, window_bounds = array<i64: 128, 128>}, {transform_indices = @transform_5, window_bounds = array<i64: 128, 1>}, {transform_indices = @transform_6, window_bounds = array<i64: 1, 128, 128>}]} {
    %c0 = arith.constant 0 : index
    %c0_0 = arith.constant 0 : index
    %c0_1 = arith.constant 0 : index
    %0 = vector.load %arg3[%c0, %c0_0, %c0_1] : memref<1x768x128xf32, #tpu.memory_space<vmem>>, vector<1x768x128xf32>
    %1 = vector.shape_cast %0 : vector<1x768x128xf32> to vector<768x128xf32>
    %2 = arith.truncf %1 : vector<768x128xf32> to vector<768x128xbf16>
    %c0_2 = arith.constant 0 : index
    %c0_3 = arith.constant 0 : index
    %3 = vector.load %arg5[%c0_2, %c0_3] : memref<128x768xf32, #tpu.memory_space<vmem>>, vector<128x768xf32>
    %4 = arith.truncf %3 : vector<128x768xf32> to vector<128x768xbf16>
    %cst = arith.constant dense<0.000000e+00> : vector<128x128xf32>
    %5 = tpu.matmul %4, %2, %cst {dimension_numbers = #tpu.dot_dimension_numbers<[1], [0], [0], [1], [0, 0, 1, 1], [], []>} : vector<128x768xbf16>, vector<768x128xbf16>, vector<128x128xf32> -> vector<128x128xf32>
    %c0_4 = arith.constant 0 : index
    %c0_5 = arith.constant 0 : index
    %6 = vector.load %arg6[%c0_4, %c0_5] : memref<128x1xf32, #tpu.memory_space<vmem>>, vector<128x1xf32>
    %7 = vector.broadcast %6 : vector<128x1xf32> to vector<128x128xf32>
    %8 = arith.addf %5, %7 : vector<128x128xf32>
    %cst_6 = arith.constant 0.000000e+00 : f32
    %9 = vector.broadcast %cst_6 : f32 to vector<128x128xf32>
    %10 = arith.maximumf %8, %9 : vector<128x128xf32>
    %c0_7 = arith.constant 0 : index
    %c0_8 = arith.constant 0 : index
    %11 = vector.load %arg7[%c0_7, %c0_8] : memref<128x128xf32, #tpu.memory_space<vmem>>, vector<128x128xf32>
    %12 = arith.truncf %11 : vector<128x128xf32> to vector<128x128xbf16>
    %13 = arith.truncf %10 : vector<128x128xf32> to vector<128x128xbf16>
    %cst_9 = arith.constant dense<0.000000e+00> : vector<128x128xf32>
    %14 = tpu.matmul %12, %13, %cst_9 {dimension_numbers = #tpu.dot_dimension_numbers<[1], [0], [0], [1], [0, 0, 1, 1], [], []>} : vector<128x128xbf16>, vector<128x128xbf16>, vector<128x128xf32> -> vector<128x128xf32>
    %c0_10 = arith.constant 0 : index
    %c0_11 = arith.constant 0 : index
    %15 = vector.load %arg8[%c0_10, %c0_11] : memref<128x1xf32, #tpu.memory_space<vmem>>, vector<128x1xf32>
    %16 = vector.broadcast %15 : vector<128x1xf32> to vector<128x128xf32>
    %17 = arith.addf %14, %16 : vector<128x128xf32>
    %c0_12 = arith.constant 0 : index
    %c0_13 = arith.constant 0 : index
    %c0_14 = arith.constant 0 : index
    %18 = vector.load %arg4[%c0_12, %c0_13, %c0_14] : memref<1x128x128xf32, #tpu.memory_space<vmem>>, vector<1x128x128xf32>
    %19 = vector.shape_cast %18 : vector<1x128x128xf32> to vector<128x128xf32>
    %20 = arith.addf %17, %19 : vector<128x128xf32>
    %c0_15 = arith.constant 0 : index
    %c0_16 = arith.constant 0 : index
    %c0_17 = arith.constant 0 : index
    %21 = vector.load %arg9[%c0_15, %c0_16, %c0_17] : memref<1x128x128xf32, #tpu.memory_space<vmem>>, vector<1x128x128xf32>
    %22 = vector.shape_cast %21 : vector<1x128x128xf32> to vector<128x128xf32>
    %23 = vector.shape_cast %20 : vector<128x128xf32> to vector<1x128x128xf32>
    tpu.vector_store %arg9[%c0_15, %c0_16, %c0_17], %23 {strides = array<i32>} : memref<1x128x128xf32, #tpu.memory_space<vmem>>, vector<1x128x128xf32>,
    return
  }
  func.func @transform_0(%arg0: i32, %arg1: i32, %arg2: i32) -> (i32, i32, i32) {
    %c0_i32 = arith.constant 0 : i32
    %c0_i32_0 = arith.constant 0 : i32
    return %arg0, %c0_i32, %arg2 : i32, i32, i32
  }
  func.func @transform_1(%arg0: i32, %arg1: i32, %arg2: i32) -> (i32, i32, i32) {
    %c0_i32 = arith.constant 0 : i32
    return %arg0, %arg1, %arg2 : i32, i32, i32
  }
  func.func @transform_2(%arg0: i32, %arg1: i32, %arg2: i32) -> (i32, i32) {
    %c0_i32 = arith.constant 0 : i32
    %c0_i32_0 = arith.constant 0 : i32
    %c0_i32_1 = arith.constant 0 : i32
    return %c0_i32, %c0_i32_0 : i32, i32
  }
  func.func @transform_3(%arg0: i32, %arg1: i32, %arg2: i32) -> (i32, i32) {
    %c0_i32 = arith.constant 0 : i32
    %c0_i32_0 = arith.constant 0 : i32
    %c0_i32_1 = arith.constant 0 : i32
    return %c0_i32, %c0_i32_0 : i32, i32
  }
  func.func @transform_4(%arg0: i32, %arg1: i32, %arg2: i32) -> (i32, i32) {
    %c0_i32 = arith.constant 0 : i32
    %c0_i32_0 = arith.constant 0 : i32
    return %arg1, %c0_i32 : i32, i32
  }
  func.func @transform_5(%arg0: i32, %arg1: i32, %arg2: i32) -> (i32, i32) {
    %c0_i32 = arith.constant 0 : i32
    %c0_i32_0 = arith.constant 0 : i32
    return %arg1, %c0_i32 : i32, i32
  }
  func.func @transform_6(%arg0: i32, %arg1: i32, %arg2: i32) -> (i32, i32, i32) {
    %c0_i32 = arith.constant 0 : i32
    return %arg0, %arg1, %arg2 : i32, i32, i32
  }
}

</mosaic_0001>

<llo_original>
// kernel: update_resnet256.1
$region0: #{update_resnet256.1}
  #allocation0 [shape = 'u32[]', space=smem, size = 0x4, offset = 0x4, fixed_abs, tag = 'smem constant byte address 0x4 - core index']
  #allocation1 [shape = 'u32[144,128]{1,0:T(1,128)}', space=vmem, size = 0x12000, scoped, tag = 'internal scratch']
  %s0 = inlined_call_operand.vmem [shape: f32[1,768,128], index: 0, kind: input, shape index: {}]
  %s1 = inlined_call_operand.vmem [shape: f32[1,256,128], index: 1, kind: input, shape index: {}]
  %s2 = inlined_call_operand.vmem [shape: f32[128,768], index: 2, kind: input, shape index: {}]
  %s3 = inlined_call_operand.vmem [shape: f32[128,1], index: 3, kind: input, shape index: {}]
  %s4 = inlined_call_operand.vmem [shape: f32[256,128], index: 4, kind: input, shape index: {}]
  %s5 = inlined_call_operand.vmem [shape: f32[256,1], index: 5, kind: input, shape index: {}]
  %s6 = inlined_call_operand.vmem [shape: f32[1,256,128], index: 6, kind: output, shape index: {}]
  %s7 = sld [smem:[#allocation0]]
  $region57: #{update_resnet256.1} parent=0
    _
  %s9 = ssub.s32 1, %s7
  %s10 = scalar_select 0, %s9, %s7
  loop: start=0, step=1, limit=4
  $region2: #{update_resnet256.1} parent=0 // loop_pre_header
    _
  $region3: #{update_resnet256.1} parent=0 // loop_header
    %s12 = sphi 0, %s16
    %p13 = scmp.ge.s32.totalorder %s12, 4
    %s19 = sphi 0, %s38
    %s20 = sphi 0, %s34
    %s21 = sphi 0, %s30
    %s22 = sphi 0, %s19
    %s23 = sphi 0, %s20
    %s24 = sphi 0, %s21
    %s25 = sphi 0, %s22
    %s26 = sphi 0, %s23
    %s27 = sphi 0, %s24
    %s43 = sphi 0, %s45
    %s46 = sphi 0, %s43
    %s47 = sphi 0, %s46
    %s63 = sphi 0, %s47
    %s73 = sphi 0, %s75
    %s76 = sphi 0, %s73
    %s77 = sphi 0, %s76
    %s93 = sphi 0, %s77
    %s97 = sphi 0, %s97
    %s99 = sphi 0, %s97
    %s100 = sphi 0, %s99
    %s114 = sphi 0, %s100
    %s118 = sphi 0, %s118
    %s120 = sphi 0, %s118
    %s121 = sphi 0, %s120
    %s135 = sphi 0, %s121
    %s141 = sphi 0, %s143
    %s144 = sphi 0, %s141
    %s145 = sphi 0, %s144
    %s161 = sphi 0, %s145
    %s167 = sphi 0, %s169
    %s170 = sphi 0, %s167
    %s171 = sphi 0, %s170
    %s187 = sphi 0, %s171
    %s197 = sphi 0, %s199
    %s200 = sphi 0, %s197
    %s201 = sphi 0, %s200
    %s217 = sphi 0, %s201
  $region4: #{update_resnet256.1} parent=0 // loop_header_branch
    %15 = sbr.rel (%p13) target = $region8
  $region5: #{update_resnet256.1} parent=0 // loop_body
    %s17 = ssub.s32 %s12, 1
    %s18 = ssub.s32 %s12, 2
    %s28 = sadd.s32 1, %s21
    %p29 = scmp.ge.s32.totalorder %s28, 1
    %s30 = scalar_select %p29, 0, %s28
    %s31 = sadd.s32 1, %s20
    %s32 = scalar_select %p29, %s31, %s20
    %p33 = scmp.ge.s32.totalorder %s32, 2
    %s34 = scalar_select %p33, 0, %s32
    %s35 = sadd.s32 1, %s19
    %s36 = scalar_select %p33, %s35, %s19
    %p37 = scmp.ge.s32.totalorder %s36, 1
    %s38 = scalar_select %p37, 0, %s36
    %s39 = ssub.s32 %s19, %s38
    %s40 = ssub.s32 %s21, %s30
    %s41 = sor.u32 %s39, %s40
    %p42 = scmp.eq.s32.totalorder %s41, 0
    %s44 = sadd.s32 %s43, 1
    %s45 = scalar_select %p42, %s43, %s44
    %p48 = pneg %p42
    %p49 = scmp.eq.s32.totalorder %s12, 1
    %p50 = por %p48, %p49
    %p51 = scmp.ne.s32.totalorder %s43, %s46
    %p52 = scmp.eq.s32.totalorder %s12, 0
    %p53 = por %p51, %p52
    %p54 = scmp.ne.s32.totalorder %s43, %s46
    %p55 = scmp.eq.s32.totalorder %s17, 1
    %p56 = por %p54, %p55
    %p57 = scmp.ne.s32.totalorder %s46, %s47
    %p58 = scmp.eq.s32.totalorder %s17, 0
    %p59 = por %p57, %p58
    %p60 = scmp.ne.s32.totalorder %s46, %s47
    %p61 = scmp.eq.s32.totalorder %s18, 1
    %p62 = por %p60, %p61
    %p64 = scmp.ne.s32.totalorder %s47, %s63
    %p65 = scmp.eq.s32.totalorder %s18, 0
    %p66 = por %p64, %p65
    %s67 = ssub.s32 %s19, %s38
    %s68 = ssub.s32 %s20, %s34
    %s69 = sor.u32 %s67, %s68
    %s70 = ssub.s32 %s21, %s30
    %s71 = sor.u32 %s69, %s70
    %p72 = scmp.eq.s32.totalorder %s71, 0
    %s74 = sadd.s32 %s73, 1
    %s75 = scalar_select %p72, %s73, %s74
    %p78 = pneg %p72
    %p79 = scmp.eq.s32.totalorder %s12, 1
    %p80 = por %p78, %p79
    %p81 = scmp.ne.s32.totalorder %s73, %s76
    %p82 = scmp.eq.s32.totalorder %s12, 0
    %p83 = por %p81, %p82
    %p84 = scmp.ne.s32.totalorder %s73, %s76
    %p85 = scmp.eq.s32.totalorder %s17, 1
    %p86 = por %p84, %p85
    %p87 = scmp.ne.s32.totalorder %s76, %s77
    %p88 = scmp.eq.s32.totalorder %s17, 0
    %p89 = por %p87, %p88
    %p90 = scmp.ne.s32.totalorder %s76, %s77
    %p91 = scmp.eq.s32.totalorder %s18, 1
    %p92 = por %p90, %p91
    %p94 = scmp.ne.s32.totalorder %s77, %s93
    %p95 = scmp.eq.s32.totalorder %s18, 0
    %p96 = por %p94, %p95
    %s98 = sadd.s32 %s97, 1
    %p101 = scmp.eq.s32.totalorder %s12, 1
    %p102 = scmp.ne.s32.totalorder %s97, %s99
    %p103 = scmp.eq.s32.totalorder %s12, 0
    %p104 = por %p102, %p103
    %p105 = scmp.ne.s32.totalorder %s97, %s99
    %p106 = scmp.eq.s32.totalorder %s17, 1
    %p107 = por %p105, %p106
    %p108 = scmp.ne.s32.totalorder %s99, %s100
    %p109 = scmp.eq.s32.totalorder %s17, 0
    %p110 = por %p108, %p109
    %p111 = scmp.ne.s32.totalorder %s99, %s100
    %p112 = scmp.eq.s32.totalorder %s18, 1
    %p113 = por %p111, %p112
    %p115 = scmp.ne.s32.totalorder %s100, %s114
    %p116 = scmp.eq.s32.totalorder %s18, 0
    %p117 = por %p115, %p116
    %s119 = sadd.s32 %s118, 1
    %p122 = scmp.eq.s32.totalorder %s12, 1
    %p123 = scmp.ne.s32.totalorder %s118, %s120
    %p124 = scmp.eq.s32.totalorder %s12, 0
    %p125 = por %p123, %p124
    %p126 = scmp.ne.s32.totalorder %s118, %s120
    %p127 = scmp.eq.s32.totalorder %s17, 1
    %p128 = por %p126, %p127
    %p129 = scmp.ne.s32.totalorder %s120, %s121
    %p130 = scmp.eq.s32.totalorder %s17, 0
    %p131 = por %p129, %p130
    %p132 = scmp.ne.s32.totalorder %s120, %s121
    %p133 = scmp.eq.s32.totalorder %s18, 1
    %p134 = por %p132, %p133
    %p136 = scmp.ne.s32.totalorder %s121, %s135
    %p137 = scmp.eq.s32.totalorder %s18, 0
    %p138 = por %p136, %p137
    %s139 = ssub.s32 %s20, %s34
    %p140 = scmp.eq.s32.totalorder %s139, 0
    %s142 = sadd.s32 %s141, 1
    %s143 = scalar_select %p140, %s141, %s142
    %p146 = pneg %p140
    %p147 = scmp.eq.s32.totalorder %s12, 1
    %p148 = por %p146, %p147
    %p149 = scmp.ne.s32.totalorder %s141, %s144
    %p150 = scmp.eq.s32.totalorder %s12, 0
    %p151 = por %p149, %p150
    %p152 = scmp.ne.s32.totalorder %s141, %s144
    %p153 = scmp.eq.s32.totalorder %s17, 1
    %p154 = por %p152, %p153
    %p155 = scmp.ne.s32.totalorder %s144, %s145
    %p156 = scmp.eq.s32.totalorder %s17, 0
    %p157 = por %p155, %p156
    %p158 = scmp.ne.s32.totalorder %s144, %s145
    %p159 = scmp.eq.s32.totalorder %s18, 1
    %p160 = por %p158, %p159
    %p162 = scmp.ne.s32.totalorder %s145, %s161
    %p163 = scmp.eq.s32.totalorder %s18, 0
    %p164 = por %p162, %p163
    %s165 = ssub.s32 %s20, %s34
    %p166 = scmp.eq.s32.totalorder %s165, 0
    %s168 = sadd.s32 %s167, 1
    %s169 = scalar_select %p166, %s167, %s168
    %p172 = pneg %p166
    %p173 = scmp.eq.s32.totalorder %s12, 1
    %p174 = por %p172, %p173
    %p175 = scmp.ne.s32.totalorder %s167, %s170
    %p176 = scmp.eq.s32.totalorder %s12, 0
    %p177 = por %p175, %p176
    %p178 = scmp.ne.s32.totalorder %s167, %s170
    %p179 = scmp.eq.s32.totalorder %s17, 1
    %p180 = por %p178, %p179
    %p181 = scmp.ne.s32.totalorder %s170, %s171
    %p182 = scmp.eq.s32.totalorder %s17, 0
    %p183 = por %p181, %p182
    %p184 = scmp.ne.s32.totalorder %s170, %s171
    %p185 = scmp.eq.s32.totalorder %s18, 1
    %p186 = por %p184, %p185
    %p188 = scmp.ne.s32.totalorder %s171, %s187
    %p189 = scmp.eq.s32.totalorder %s18, 0
    %p190 = por %p188, %p189
    %s191 = ssub.s32 %s19, %s38
    %s192 = ssub.s32 %s20, %s34
    %s193 = sor.u32 %s191, %s192
    %s194 = ssub.s32 %s21, %s30
    %s195 = sor.u32 %s193, %s194
    %p196 = scmp.eq.s32.totalorder %s195, 0
    %s198 = sadd.s32 %s197, 1
    %s199 = scalar_select %p196, %s197, %s198
    %p202 = pneg %p196
    %p203 = scmp.eq.s32.totalorder %s12, 1
    %p204 = por %p202, %p203
    %p205 = scmp.ne.s32.totalorder %s197, %s200
    %p206 = scmp.eq.s32.totalorder %s12, 0
    %p207 = por %p205, %p206
    %p208 = scmp.ne.s32.totalorder %s197, %s200
    %p209 = scmp.eq.s32.totalorder %s17, 1
    %p210 = por %p208, %p209
    %p211 = scmp.ne.s32.totalorder %s200, %s201
    %p212 = scmp.eq.s32.totalorder %s17, 0
    %p213 = por %p211, %p212
    %p214 = scmp.ne.s32.totalorder %s200, %s201
    %p215 = scmp.eq.s32.totalorder %s18, 1
    %p216 = por %p214, %p215
    %p218 = scmp.ne.s32.totalorder %s201, %s217
    %p219 = scmp.eq.s32.totalorder %s18, 0
    %p220 = por %p218, %p219
    %p221 = scmp.le.s32.totalorder 1, %s12
    %p222 = scmp.lt.s32.totalorder %s12, 3
    %p223 = pnand %p221, %p222
    %p224 = pneg %p223
    // Predicated region
    $region9: #{update_resnet256.1} parent=5 // pred_check
      _
    $region10: #{update_resnet256.1} parent=5 // pred_check_branch
      %226 = sbr.rel (%p223) target = $region12
    $region11: #{update_resnet256.1} parent=5 // pred_region
      %s227 = ssub.s32 %s12, 1
      // Predicated region
      $region13: #{update_resnet256.1} parent=11 // pred_check
        %p228 = pneg %p59
      $region14: #{update_resnet256.1} parent=11 // pred_check_branch
        %230 = sbr.rel (%p228) target = $region16
      $region15: #{update_resnet256.1} parent=11 // pred_region
        %p231 = scmp.lt.s32.totalorder %s22, 0
        %s232 = scalar_select %p231, %s22, 0
        %p233 = scmp.lt.s32.totalorder %s24, 0
        %s234 = scalar_select %p233, %s24, 0
        %s235 = smul.addr %s232, 96
        %s236 = sadd.s32 %s234, %s235
        %s237 = smul.addr %s236, 8
        %s238 = scalar_lea.vmem %s0, %s237
      $region16: #{update_resnet256.1} parent=11 // pred_fallthru
        _
      // Predicated region
      $region17: #{update_resnet256.1} parent=11 // pred_check
        %p239 = pneg %p110
      $region18: #{update_resnet256.1} parent=11 // pred_check_branch
        %241 = sbr.rel (%p239) target = $region20
      $region19: #{update_resnet256.1} parent=11 // pred_region
        _
      $region20: #{update_resnet256.1} parent=11 // pred_fallthru
        _
      // Predicated region
      $region21: #{update_resnet256.1} parent=11 // pred_check
        %p242 = pneg %p131
      $region22: #{update_resnet256.1} parent=11 // pred_check_branch
        %244 = sbr.rel (%p242) target = $region24
      $region23: #{update_resnet256.1} parent=11 // pred_region
        _
      $region24: #{update_resnet256.1} parent=11 // pred_fallthru
        _
    $region12: #{update_resnet256.1} parent=5 // pred_fallthru
      _
    %p245 = scmp.lt.s32.totalorder %s12, 2
    // Predicated region
    $region25: #{update_resnet256.1} parent=5 // pred_check
      %p246 = pneg %p245
    $region26: #{update_resnet256.1} parent=5 // pred_check_branch
      %248 = sbr.rel (%p246) target = $region28
    $region27: #{update_resnet256.1} parent=5 // pred_region
      // Predicated region
      $region29: #{update_resnet256.1} parent=27 // pred_check
        %p249 = pneg %p83
      $region30: #{update_resnet256.1} parent=27 // pred_check_branch
        %251 = sbr.rel (%p249) target = $region32
      $region31: #{update_resnet256.1} parent=27 // pred_region
        %s252 = smul.u32 16, %s20
        %p253 = scmp.lt.s32.totalorder %s19, 0
        %s254 = scalar_select %p253, %s19, 0
        %p255 = scmp.lt.s32.totalorder %s252, 31
        %s256 = scalar_select %p255, %s252, 31
        %p257 = scmp.lt.s32.totalorder %s21, 0
        %s258 = scalar_select %p257, %s21, 0
        %s259 = sadd.s32 %s258, %s256
        %s260 = smul.addr %s254, 32
        %s261 = sadd.s32 %s259, %s260
        %s262 = smul.addr %s261, 8
        %s263 = scalar_lea.vmem %s1, %s262
        %s264 = smul.u32 16, %s20
      $region32: #{update_resnet256.1} parent=27 // pred_fallthru
        _
      // Predicated region
      $region33: #{update_resnet256.1} parent=27 // pred_check
        %p265 = pneg %p151
      $region34: #{update_resnet256.1} parent=27 // pred_check_branch
        %267 = sbr.rel (%p265) target = $region36
      $region35: #{update_resnet256.1} parent=27 // pred_region
        %s268 = smul.u32 16, %s20
        %p269 = scmp.lt.s32.totalorder %s268, 31
        %s270 = scalar_select %p269, %s268, 31
        %s271 = smul.addr %s270, 8
        %s272 = scalar_lea.vmem %s4, %s271
        %s273 = smul.u32 16, %s20
      $region36: #{update_resnet256.1} parent=27 // pred_fallthru
        _
      // Predicated region
      $region37: #{update_resnet256.1} parent=27 // pred_check
        %p274 = pneg %p177
      $region38: #{update_resnet256.1} parent=27 // pred_check_branch
        %276 = sbr.rel (%p274) target = $region40
      $region39: #{update_resnet256.1} parent=27 // pred_region
        %s277 = smul.u32 16, %s20
        %p278 = scmp.lt.s32.totalorder %s277, 31
        %s279 = scalar_select %p278, %s277, 31
        %s280 = smul.addr %s279, 8
        %s281 = scalar_lea.vmem %s5, %s280
        %s282 = smul.u32 16, %s20
      $region40: #{update_resnet256.1} parent=27 // pred_fallthru
        _
    $region28: #{update_resnet256.1} parent=5 // pred_fallthru
      _
    %p283 = scmp.le.s32.totalorder 1, %s12
    %p284 = scmp.lt.s32.totalorder %s12, 3
    %p285 = pnand %p283, %p284
    %p286 = pneg %p285
    // Predicated region
    $region41: #{update_resnet256.1} parent=5 // pred_check
      _
    $region42: #{update_resnet256.1} parent=5 // pred_check_branch
      %288 = sbr.rel (%p285) target = $region44
    $region43: #{update_resnet256.1} parent=5 // pred_region
      %s289 = ssub.s32 %s12, 1
      %p290 = scmp.lt.s32.totalorder %s22, 0
      %s291 = scalar_select %p290, %s22, 0
      %p292 = scmp.lt.s32.totalorder %s24, 0
      %s293 = scalar_select %p292, %s24, 0
      %s294 = smul.addr %s291, 96
      %s295 = sadd.s32 %s293, %s294
      %s296 = smul.addr %s295, 8
      %s297 = scalar_lea.vmem %s0, %s296
      %p298 = pneg %p59
      %p299 = pneg %p56
      %s300 = smul.u32 16, %s23
      %p301 = scmp.lt.s32.totalorder %s22, 0
      %s302 = scalar_select %p301, %s22, 0
      %p303 = scmp.lt.s32.totalorder %s300, 31
      %s304 = scalar_select %p303, %s300, 31
      %p305 = scmp.lt.s32.totalorder %s24, 0
      %s306 = scalar_select %p305, %s24, 0
      %s307 = sadd.s32 %s306, %s304
      %s308 = smul.addr %s302, 32
      %s309 = sadd.s32 %s307, %s308
      %s310 = smul.addr %s309, 8
      %s311 = scalar_lea.vmem %s1, %s310
      %p312 = pneg %p89
      %p313 = pneg %p86
      %p314 = pneg %p110
      %p315 = pneg %p107
      %p316 = pneg %p131
      %p317 = pneg %p128
      %s318 = smul.u32 16, %s23
      %p319 = scmp.lt.s32.totalorder %s318, 31
      %s320 = scalar_select %p319, %s318, 31
      %s321 = smul.addr %s320, 8
      %s322 = scalar_lea.vmem %s4, %s321
      %p323 = pneg %p157
      %p324 = pneg %p154
      %s325 = smul.u32 16, %s23
      %p326 = scmp.lt.s32.totalorder %s325, 31
      %s327 = scalar_select %p326, %s325, 31
      %s328 = smul.addr %s327, 8
      %s329 = scalar_lea.vmem %s5, %s328
      %p330 = pneg %p183
      %p331 = pneg %p180
      %p332 = pneg %p213
      %p333 = pneg %p210
      %s334 = smul.u32 16, %s23
      %p335 = scmp.lt.s32.totalorder %s22, 0
      %s336 = scalar_select %p335, %s22, 0
      %p337 = scmp.lt.s32.totalorder %s334, 31
      %s338 = scalar_select %p337, %s334, 31
      %p339 = scmp.lt.s32.totalorder %s24, 0
      %s340 = scalar_select %p339, %s24, 0
      %s341 = sadd.s32 %s340, %s338
      %s342 = smul.addr %s336, 32
      %s343 = sadd.s32 %s341, %s342
      %s344 = smul.addr %s343, 8
      %s345 = scalar_lea.vmem %s6, %s344
      %p346 = scmp.lt.s32.totalorder %s22, 0
      %s347 = scalar_select %p346, %s22, 0
      %p348 = scmp.lt.s32.totalorder %s24, 0
      %s349 = scalar_select %p348, %s24, 0
      %s350 = smul.addr %s347, 96
      %s351 = sadd.s32 %s349, %s350
      %s352 = smul.addr %s351, 8
      %s353 = scalar_lea.vmem %s0, %s352
      %s354 = smul.u32 16, %s23
      %p355 = scmp.lt.s32.totalorder %s22, 0
      %s356 = scalar_select %p355, %s22, 0
      %p357 = scmp.lt.s32.totalorder %s354, 31
      %s358 = scalar_select %p357, %s354, 31
      %p359 = scmp.lt.s32.totalorder %s24, 0
      %s360 = scalar_select %p359, %s24, 0
      %s361 = sadd.s32 %s360, %s358
      %s362 = smul.addr %s356, 32
      %s363 = sadd.s32 %s361, %s362
      %s364 = smul.addr %s363, 8
      %s365 = scalar_lea.vmem %s1, %s364
      %s366 = smul.u32 16, %s23
      %s367 = smul.u32 16, %s23
      %p368 = scmp.lt.s32.totalorder %s367, 31
      %s369 = scalar_select %p368, %s367, 31
      %s370 = smul.addr %s369, 8
      %s371 = scalar_lea.vmem %s4, %s370
      %s372 = smul.u32 16, %s23
      %s373 = smul.u32 16, %s23
      %p374 = scmp.lt.s32.totalorder %s373, 31
      %s375 = scalar_select %p374, %s373, 31
      %s376 = smul.addr %s375, 8
      %s377 = scalar_lea.vmem %s5, %s376
      %s378 = smul.u32 16, %s23
      %s379 = smul.u32 16, %s23
      %p380 = scmp.lt.s32.totalorder %s22, 0
      %s381 = scalar_select %p380, %s22, 0
      %p382 = scmp.lt.s32.totalorder %s379, 31
      %s383 = scalar_select %p382, %s379, 31
      %p384 = scmp.lt.s32.totalorder %s24, 0
      %s385 = scalar_select %p384, %s24, 0
      %s386 = sadd.s32 %s385, %s383
      %s387 = smul.addr %s381, 32
      %s388 = sadd.s32 %s386, %s387
      %s389 = smul.addr %s388, 8
      %s390 = scalar_lea.vmem %s6, %s389
      %s391 = smul.u32 16, %s23
      %v393 = vld [vmem:[%s353] sm:$0xff]
      %v394 = vld [vmem:[%s353 + $0x8] sm:$0xff]
      %v395 = vld [vmem:[%s353 + $0x10] sm:$0xff]
      %v396 = vld [vmem:[%s353 + $0x18] sm:$0xff]
      %v397 = vld [vmem:[%s353 + $0x20] sm:$0xff]
      %v398 = vld [vmem:[%s353 + $0x28] sm:$0xff]
      %v399 = vld [vmem:[%s353 + $0x30] sm:$0xff]
      %v400 = vld [vmem:[%s353 + $0x38] sm:$0xff]
      %v401 = vld [vmem:[%s353 + $0x40] sm:$0xff]
      %v402 = vld [vmem:[%s353 + $0x48] sm:$0xff]
      %v403 = vld [vmem:[%s353 + $0x50] sm:$0xff]
      %v404 = vld [vmem:[%s353 + $0x58] sm:$0xff]
      %v405 = vld [vmem:[%s353 + $0x60] sm:$0xff]
      %v406 = vld [vmem:[%s353 + $0x68] sm:$0xff]
      %v407 = vld [vmem:[%s353 + $0x70] sm:$0xff]
      %v408 = vld [vmem:[%s353 + $0x78] sm:$0xff]
      %v409 = vld [vmem:[%s353 + $0x80] sm:$0xff]
      %v410 = vld [vmem:[%s353 + $0x88] sm:$0xff]
      %v411 = vld [vmem:[%s353 + $0x90] sm:$0xff]
      %v412 = vld [vmem:[%s353 + $0x98] sm:$0xff]
      %v413 = vld [vmem:[%s353 + $0xa0] sm:$0xff]
      %v414 = vld [vmem:[%s353 + $0xa8] sm:$0xff]
      %v415 = vld [vmem:[%s353 + $0xb0] sm:$0xff]
      %v416 = vld [vmem:[%s353 + $0xb8] sm:$0xff]
      %v417 = vld [vmem:[%s353 + $0xc0] sm:$0xff]
      %v418 = vld [vmem:[%s353 + $0xc8] sm:$0xff]
      %v419 = vld [vmem:[%s353 + $0xd0] sm:$0xff]
      %v420 = vld [vmem:[%s353 + $0xd8] sm:$0xff]
      %v421 = vld [vmem:[%s353 + $0xe0] sm:$0xff]
      %v422 = vld [vmem:[%s353 + $0xe8] sm:$0xff]
      %v423 = vld [vmem:[%s353 + $0xf0] sm:$0xff]
      %v424 = vld [vmem:[%s353 + $0xf8] sm:$0xff]
      %v425 = vld [vmem:[%s353 + $0x100] sm:$0xff]
      %v426 = vld [vmem:[%s353 + $0x108] sm:$0xff]
      %v427 = vld [vmem:[%s353 + $0x110] sm:$0xff]
      %v428 = vld [vmem:[%s353 + $0x118] sm:$0xff]
      %v429 = vld [vmem:[%s353 + $0x120] sm:$0xff]
      %v430 = vld [vmem:[%s353 + $0x128] sm:$0xff]
      %v431 = vld [vmem:[%s353 + $0x130] sm:$0xff]
      %v432 = vld [vmem:[%s353 + $0x138] sm:$0xff]
      %v433 = vld [vmem:[%s353 + $0x140] sm:$0xff]
      %v434 = vld [vmem:[%s353 + $0x148] sm:$0xff]
      %v435 = vld [vmem:[%s353 + $0x150] sm:$0xff]
      %v436 = vld [vmem:[%s353 + $0x158] sm:$0xff]
      %v437 = vld [vmem:[%s353 + $0x160] sm:$0xff]
      %v438 = vld [vmem:[%s353 + $0x168] sm:$0xff]
      %v439 = vld [vmem:[%s353 + $0x170] sm:$0xff]
      %v440 = vld [vmem:[%s353 + $0x178] sm:$0xff]
      %v441 = vld [vmem:[%s353 + $0x180] sm:$0xff]
      %v442 = vld [vmem:[%s353 + $0x188] sm:$0xff]
      %v443 = vld [vmem:[%s353 + $0x190] sm:$0xff]
      %v444 = vld [vmem:[%s353 + $0x198] sm:$0xff]
      %v445 = vld [vmem:[%s353 + $0x1a0] sm:$0xff]
      %v446 = vld [vmem:[%s353 + $0x1a8] sm:$0xff]
      %v447 = vld [vmem:[%s353 + $0x1b0] sm:$0xff]
      %v448 = vld [vmem:[%s353 + $0x1b8] sm:$0xff]
      %v449 = vld [vmem:[%s353 + $0x1c0] sm:$0xff]
      %v450 = vld [vmem:[%s353 + $0x1c8] sm:$0xff]
      %v451 = vld [vmem:[%s353 + $0x1d0] sm:$0xff]
      %v452 = vld [vmem:[%s353 + $0x1d8] sm:$0xff]
      %v453 = vld [vmem:[%s353 + $0x1e0] sm:$0xff]
      %v454 = vld [vmem:[%s353 + $0x1e8] sm:$0xff]
      %v455 = vld [vmem:[%s353 + $0x1f0] sm:$0xff]
      %v456 = vld [vmem:[%s353 + $0x1f8] sm:$0xff]
      %v457 = vld [vmem:[%s353 + $0x200] sm:$0xff]
      %v458 = vld [vmem:[%s353 + $0x208] sm:$0xff]
      %v459 = vld [vmem:[%s353 + $0x210] sm:$0xff]
      %v460 = vld [vmem:[%s353 + $0x218] sm:$0xff]
      %v461 = vld [vmem:[%s353 + $0x220] sm:$0xff]
      %v462 = vld [vmem:[%s353 + $0x228] sm:$0xff]
      %v463 = vld [vmem:[%s353 + $0x230] sm:$0xff]
      %v464 = vld [vmem:[%s353 + $0x238] sm:$0xff]
      %v465 = vld [vmem:[%s353 + $0x240] sm:$0xff]
      %v466 = vld [vmem:[%s353 + $0x248] sm:$0xff]
      %v467 = vld [vmem:[%s353 + $0x250] sm:$0xff]
      %v468 = vld [vmem:[%s353 + $0x258] sm:$0xff]
      %v469 = vld [vmem:[%s353 + $0x260] sm:$0xff]
      %v470 = vld [vmem:[%s353 + $0x268] sm:$0xff]
      %v471 = vld [vmem:[%s353 + $0x270] sm:$0xff]
      %v472 = vld [vmem:[%s353 + $0x278] sm:$0xff]
      %v473 = vld [vmem:[%s353 + $0x280] sm:$0xff]
      %v474 = vld [vmem:[%s353 + $0x288] sm:$0xff]
      %v475 = vld [vmem:[%s353 + $0x290] sm:$0xff]
      %v476 = vld [vmem:[%s353 + $0x298] sm:$0xff]
      %v477 = vld [vmem:[%s353 + $0x2a0] sm:$0xff]
      %v478 = vld [vmem:[%s353 + $0x2a8] sm:$0xff]
      %v479 = vld [vmem:[%s353 + $0x2b0] sm:$0xff]
      %v480 = vld [vmem:[%s353 + $0x2b8] sm:$0xff]
      %v481 = vld [vmem:[%s353 + $0x2c0] sm:$0xff]
      %v482 = vld [vmem:[%s353 + $0x2c8] sm:$0xff]
      %v483 = vld [vmem:[%s353 + $0x2d0] sm:$0xff]
      %v484 = vld [vmem:[%s353 + $0x2d8] sm:$0xff]
      %v485 = vld [vmem:[%s353 + $0x2e0] sm:$0xff]
      %v486 = vld [vmem:[%s353 + $0x2e8] sm:$0xff]
      %v487 = vld [vmem:[%s353 + $0x2f0] sm:$0xff]
      %v488 = vld [vmem:[%s353 + $0x2f8] sm:$0xff]
      %v489 = vpack.c.bf16 %v394, %v393
      %v490 = vpack.c.bf16 %v396, %v395
      %v491 = vpack.c.bf16 %v398, %v397
      %v492 = vpack.c.bf16 %v400, %v399
      %v493 = vpack.c.bf16 %v402, %v401
      %v494 = vpack.c.bf16 %v404, %v403
      %v495 = vpack.c.bf16 %v406, %v405
      %v496 = vpack.c.bf16 %v408, %v407
      %v497 = vpack.c.bf16 %v410, %v409
      %v498 = vpack.c.bf16 %v412, %v411
      %v499 = vpack.c.bf16 %v414, %v413
      %v500 = vpack.c.bf16 %v416, %v415
      %v501 = vpack.c.bf16 %v418, %v417
      %v502 = vpack.c.bf16 %v420, %v419
      %v503 = vpack.c.bf16 %v422, %v421
      %v504 = vpack.c.bf16 %v424, %v423
      %v505 = vpack.c.bf16 %v426, %v425
      %v506 = vpack.c.bf16 %v428, %v427
      %v507 = vpack.c.bf16 %v430, %v429
      %v508 = vpack.c.bf16 %v432, %v431
      %v509 = vpack.c.bf16 %v434, %v433
      %v510 = vpack.c.bf16 %v436, %v435
      %v511 = vpack.c.bf16 %v438, %v437
      %v512 = vpack.c.bf16 %v440, %v439
      %v513 = vpack.c.bf16 %v442, %v441
      %v514 = vpack.c.bf16 %v444, %v443
      %v515 = vpack.c.bf16 %v446, %v445
      %v516 = vpack.c.bf16 %v448, %v447
      %v517 = vpack.c.bf16 %v450, %v449
      %v518 = vpack.c.bf16 %v452, %v451
      %v519 = vpack.c.bf16 %v454, %v453
      %v520 = vpack.c.bf16 %v456, %v455
      %v521 = vpack.c.bf16 %v458, %v457
      %v522 = vpack.c.bf16 %v460, %v459
      %v523 = vpack.c.bf16 %v462, %v461
      %v524 = vpack.c.bf16 %v464, %v463
      %v525 = vpack.c.bf16 %v466, %v465
      %v526 = vpack.c.bf16 %v468, %v467
      %v527 = vpack.c.bf16 %v470, %v469
      %v528 = vpack.c.bf16 %v472, %v471
      %v529 = vpack.c.bf16 %v474, %v473
      %v530 = vpack.c.bf16 %v476, %v475
      %v531 = vpack.c.bf16 %v478, %v477
      %v532 = vpack.c.bf16 %v480, %v479
      %v533 = vpack.c.bf16 %v482, %v481
      %v534 = vpack.c.bf16 %v484, %v483
      %v535 = vpack.c.bf16 %v486, %v485
      %v536 = vpack.c.bf16 %v488, %v487
      %v537 = vld [vmem:[%s2] sm:$0xff]
      %v538 = vld [vmem:[%s2 + $0x8] sm:$0xff]
      %v539 = vld [vmem:[%s2 + $0x10] sm:$0xff]
      %v540 = vld [vmem:[%s2 + $0x18] sm:$0xff]
      %v541 = vld [vmem:[%s2 + $0x20] sm:$0xff]
      %v542 = vld [vmem:[%s2 + $0x28] sm:$0xff]
      %v543 = vld [vmem:[%s2 + $0x30] sm:$0xff]
      %v544 = vld [vmem:[%s2 + $0x38] sm:$0xff]
      %v545 = vld [vmem:[%s2 + $0x40] sm:$0xff]
      %v546 = vld [vmem:[%s2 + $0x48] sm:$0xff]
      %v547 = vld [vmem:[%s2 + $0x50] sm:$0xff]
      %v548 = vld [vmem:[%s2 + $0x58] sm:$0xff]
      %v549 = vld [vmem:[%s2 + $0x60] sm:$0xff]
      %v550 = vld [vmem:[%s2 + $0x68] sm:$0xff]
      %v551 = vld [vmem:[%s2 + $0x70] sm:$0xff]
      %v552 = vld [vmem:[%s2 + $0x78] sm:$0xff]
      %v553 = vld [vmem:[%s2 + $0x80] sm:$0xff]
      %v554 = vld [vmem:[%s2 + $0x88] sm:$0xff]
      %v555 = vld [vmem:[%s2 + $0x90] sm:$0xff]
      %v556 = vld [vmem:[%s2 + $0x98] sm:$0xff]
      %v557 = vld [vmem:[%s2 + $0xa0] sm:$0xff]
      %v558 = vld [vmem:[%s2 + $0xa8] sm:$0xff]
      %v559 = vld [vmem:[%s2 + $0xb0] sm:$0xff]
      %v560 = vld [vmem:[%s2 + $0xb8] sm:$0xff]
      %v561 = vld [vmem:[%s2 + $0xc0] sm:$0xff]
      %v562 = vld [vmem:[%s2 + $0xc8] sm:$0xff]
      %v563 = vld [vmem:[%s2 + $0xd0] sm:$0xff]
      %v564 = vld [vmem:[%s2 + $0xd8] sm:$0xff]
      %v565 = vld [vmem:[%s2 + $0xe0] sm:$0xff]
      %v566 = vld [vmem:[%s2 + $0xe8] sm:$0xff]
      %v567 = vld [vmem:[%s2 + $0xf0] sm:$0xff]
      %v568 = vld [vmem:[%s2 + $0xf8] sm:$0xff]
      %v569 = vld [vmem:[%s2 + $0x100] sm:$0xff]
      %v570 = vld [vmem:[%s2 + $0x108] sm:$0xff]
      %v571 = vld [vmem:[%s2 + $0x110] sm:$0xff]
      %v572 = vld [vmem:[%s2 + $0x118] sm:$0xff]
      %v573 = vld [vmem:[%s2 + $0x120] sm:$0xff]
      %v574 = vld [vmem:[%s2 + $0x128] sm:$0xff]
      %v575 = vld [vmem:[%s2 + $0x130] sm:$0xff]
      %v576 = vld [vmem:[%s2 + $0x138] sm:$0xff]
      %v577 = vld [vmem:[%s2 + $0x140] sm:$0xff]
      %v578 = vld [vmem:[%s2 + $0x148] sm:$0xff]
      %v579 = vld [vmem:[%s2 + $0x150] sm:$0xff]
      %v580 = vld [vmem:[%s2 + $0x158] sm:$0xff]
      %v581 = vld [vmem:[%s2 + $0x160] sm:$0xff]
      %v582 = vld [vmem:[%s2 + $0x168] sm:$0xff]
      %v583 = vld [vmem:[%s2 + $0x170] sm:$0xff]
      %v584 = vld [vmem:[%s2 + $0x178] sm:$0xff]
      %v585 = vld [vmem:[%s2 + $0x180] sm:$0xff]
      %v586 = vld [vmem:[%s2 + $0x188] sm:$0xff]
      %v587 = vld [vmem:[%s2 + $0x190] sm:$0xff]
      %v588 = vld [vmem:[%s2 + $0x198] sm:$0xff]
      %v589 = vld [vmem:[%s2 + $0x1a0] sm:$0xff]
      %v590 = vld [vmem:[%s2 + $0x1a8] sm:$0xff]
      %v591 = vld [vmem:[%s2 + $0x1b0] sm:$0xff]
      %v592 = vld [vmem:[%s2 + $0x1b8] sm:$0xff]
      %v593 = vld [vmem:[%s2 + $0x1c0] sm:$0xff]
      %v594 = vld [vmem:[%s2 + $0x1c8] sm:$0xff]
      %v595 = vld [vmem:[%s2 + $0x1d0] sm:$0xff]
      %v596 = vld [vmem:[%s2 + $0x1d8] sm:$0xff]
      %v597 = vld [vmem:[%s2 + $0x1e0] sm:$0xff]
      %v598 = vld [vmem:[%s2 + $0x1e8] sm:$0xff]
      %v599 = vld [vmem:[%s2 + $0x1f0] sm:$0xff]
      %v600 = vld [vmem:[%s2 + $0x1f8] sm:$0xff]
      %v601 = vld [vmem:[%s2 + $0x200] sm:$0xff]
      %v602 = vld [vmem:[%s2 + $0x208] sm:$0xff]
      %v603 = vld [vmem:[%s2 + $0x210] sm:$0xff]
      %v604 = vld [vmem:[%s2 + $0x218] sm:$0xff]
      %v605 = vld [vmem:[%s2 + $0x220] sm:$0xff]
      %v606 = vld [vmem:[%s2 + $0x228] sm:$0xff]
      %v607 = vld [vmem:[%s2 + $0x230] sm:$0xff]
      %v608 = vld [vmem:[%s2 + $0x238] sm:$0xff]
      %v609 = vld [vmem:[%s2 + $0x240] sm:$0xff]
      %v610 = vld [vmem:[%s2 + $0x248] sm:$0xff]
      %v611 = vld [vmem:[%s2 + $0x250] sm:$0xff]
      %v612 = vld [vmem:[%s2 + $0x258] sm:$0xff]
      %v613 = vld [vmem:[%s2 + $0x260] sm:$0xff]
      %v614 = vld [vmem:[%s2 + $0x268] sm:$0xff]
      %v615 = vld [vmem:[%s2 + $0x270] sm:$0xff]
      %v616 = vld [vmem:[%s2 + $0x278] sm:$0xff]
      %v617 = vld [vmem:[%s2 + $0x280] sm:$0xff]
      %v618 = vld [vmem:[%s2 + $0x288] sm:$0xff]
      %v619 = vld [vmem:[%s2 + $0x290] sm:$0xff]
      %v620 = vld [vmem:[%s2 + $0x298] sm:$0xff]
      %v621 = vld [vmem:[%s2 + $0x2a0] sm:$0xff]
      %v622 = vld [vmem:[%s2 + $0x2a8] sm:$0xff]
      %v623 = vld [vmem:[%s2 + $0x2b0] sm:$0xff]
      %v624 = vld [vmem:[%s2 + $0x2b8] sm:$0xff]
      %v625 = vld [vmem:[%s2 + $0x2c0] sm:$0xff]
      %v626 = vld [vmem:[%s2 + $0x2c8] sm:$0xff]
      %v627 = vld [vmem:[%s2 + $0x2d0] sm:$0xff]
      %v628 = vld [vmem:[%s2 + $0x2d8] sm:$0xff]
      %v629 = vld [vmem:[%s2 + $0x2e0] sm:$0xff]
      %v630 = vld [vmem:[%s2 + $0x2e8] sm:$0xff]
      %v631 = vld [vmem:[%s2 + $0x2f0] sm:$0xff]
      %v632 = vld [vmem:[%s2 + $0x2f8] sm:$0xff]
      %v633 = vpack.c.bf16 %v543, %v537
      %v634 = vpack.c.bf16 %v544, %v538
      %v635 = vpack.c.bf16 %v545, %v539
      %v636 = vpack.c.bf16 %v546, %v540
      %v637 = vpack.c.bf16 %v547, %v541
      %v638 = vpack.c.bf16 %v548, %v542
      %v639 = vpack.c.bf16 %v555, %v549
      %v640 = vpack.c.bf16 %v556, %v550
      %v641 = vpack.c.bf16 %v557, %v551
      %v642 = vpack.c.bf16 %v558, %v552
      %v643 = vpack.c.bf16 %v559, %v553
      %v644 = vpack.c.bf16 %v560, %v554
      %v645 = vpack.c.bf16 %v567, %v561
      %v646 = vpack.c.bf16 %v568, %v562
      %v647 = vpack.c.bf16 %v569, %v563
      %v648 = vpack.c.bf16 %v570, %v564
      %v649 = vpack.c.bf16 %v571, %v565
      %v650 = vpack.c.bf16 %v572, %v566
      %v651 = vpack.c.bf16 %v579, %v573
      %v652 = vpack.c.bf16 %v580, %v574
      %v653 = vpack.c.bf16 %v581, %v575
      %v654 = vpack.c.bf16 %v582, %v576
      %v655 = vpack.c.bf16 %v583, %v577
      %v656 = vpack.c.bf16 %v584, %v578
      %v657 = vpack.c.bf16 %v591, %v585
      %v658 = vpack.c.bf16 %v592, %v586
      %v659 = vpack.c.bf16 %v593, %v587
      %v660 = vpack.c.bf16 %v594, %v588
      %v661 = vpack.c.bf16 %v595, %v589
      %v662 = vpack.c.bf16 %v596, %v590
      %v663 = vpack.c.bf16 %v603, %v597
      %v664 = vpack.c.bf16 %v604, %v598
      %v665 = vpack.c.bf16 %v605, %v599
      %v666 = vpack.c.bf16 %v606, %v600
      %v667 = vpack.c.bf16 %v607, %v601
      %v668 = vpack.c.bf16 %v608, %v602
      %v669 = vpack.c.bf16 %v615, %v609
      %v670 = vpack.c.bf16 %v616, %v610
      %v671 = vpack.c.bf16 %v617, %v611
      %v672 = vpack.c.bf16 %v618, %v612
      %v673 = vpack.c.bf16 %v619, %v613
      %v674 = vpack.c.bf16 %v620, %v614
      %v675 = vpack.c.bf16 %v627, %v621
      %v676 = vpack.c.bf16 %v628, %v622
      %v677 = vpack.c.bf16 %v629, %v623
      %v678 = vpack.c.bf16 %v630, %v624
      %v679 = vpack.c.bf16 %v631, %v625
      %v680 = vpack.c.bf16 %v632, %v626
      %v681 = vld [vmem:[%s3] sm:$0xff]
      %v682 = vld [vmem:[%s3 + $0x8] sm:$0xff]
      %v683 = vld [vmem:[%s3 + $0x10] sm:$0xff]
      %v684 = vld [vmem:[%s3 + $0x18] sm:$0xff]
      %v685 = vld [vmem:[%s3 + $0x20] sm:$0xff]
      %v686 = vld [vmem:[%s3 + $0x28] sm:$0xff]
      %v687 = vld [vmem:[%s3 + $0x30] sm:$0xff]
      %v688 = vld [vmem:[%s3 + $0x38] sm:$0xff]
      %v689 = vld [vmem:[%s3 + $0x40] sm:$0xff]
      %v690 = vld [vmem:[%s3 + $0x48] sm:$0xff]
      %v691 = vld [vmem:[%s3 + $0x50] sm:$0xff]
      %v692 = vld [vmem:[%s3 + $0x58] sm:$0xff]
      %v693 = vld [vmem:[%s3 + $0x60] sm:$0xff]
      %v694 = vld [vmem:[%s3 + $0x68] sm:$0xff]
      %v695 = vld [vmem:[%s3 + $0x70] sm:$0xff]
      %v696 = vld [vmem:[%s3 + $0x78] sm:$0xff]
      %698 = vset.pattern.permute.xlu0 0
      %699 = vperm.xlu0 %698, %v681
      %v700 = vpop.permute.xlu0 %699
      %703 = vset.pattern.permute.xlu0 0
      %704 = vperm.xlu0 %703, %v682
      %v705 = vpop.permute.xlu0 %704
      %708 = vset.pattern.permute.xlu0 0
      %709 = vperm.xlu0 %708, %v683
      %v710 = vpop.permute.xlu0 %709
      %713 = vset.pattern.permute.xlu0 0
      %714 = vperm.xlu0 %713, %v684
      %v715 = vpop.permute.xlu0 %714
      %718 = vset.pattern.permute.xlu0 0
      %719 = vperm.xlu0 %718, %v685
      %v720 = vpop.permute.xlu0 %719
      %723 = vset.pattern.permute.xlu0 0
      %724 = vperm.xlu0 %723, %v686
      %v725 = vpop.permute.xlu0 %724
      %728 = vset.pattern.permute.xlu0 0
      %729 = vperm.xlu0 %728, %v687
      %v730 = vpop.permute.xlu0 %729
      %733 = vset.pattern.permute.xlu0 0
      %734 = vperm.xlu0 %733, %v688
      %v735 = vpop.permute.xlu0 %734
      %738 = vset.pattern.permute.xlu0 0
      %739 = vperm.xlu0 %738, %v689
      %v740 = vpop.permute.xlu0 %739
      %743 = vset.pattern.permute.xlu0 0
      %744 = vperm.xlu0 %743, %v690
      %v745 = vpop.permute.xlu0 %744
      %748 = vset.pattern.permute.xlu0 0
      %749 = vperm.xlu0 %748, %v691
      %v750 = vpop.permute.xlu0 %749
      %753 = vset.pattern.permute.xlu0 0
      %754 = vperm.xlu0 %753, %v692
      %v755 = vpop.permute.xlu0 %754
      %758 = vset.pattern.permute.xlu0 0
      %759 = vperm.xlu0 %758, %v693
      %v760 = vpop.permute.xlu0 %759
      %763 = vset.pattern.permute.xlu0 0
      %764 = vperm.xlu0 %763, %v694
      %v765 = vpop.permute.xlu0 %764
      %768 = vset.pattern.permute.xlu0 0
      %769 = vperm.xlu0 %768, %v695
      %v770 = vpop.permute.xlu0 %769
      %773 = vset.pattern.permute.xlu0 0
      %774 = vperm.xlu0 %773, %v696
      %v775 = vpop.permute.xlu0 %774
      %777 = vmatprep.subr.bf16.mxu0 0
      %778 = vmatpush1.bf16.msra.mxu0 %v489
      %779 = vmatprep.subr.bf16.mxu0 0
      %780 = vmatpush1.bf16.msra.mxu0 %v490
      %781 = vmatprep.subr.bf16.mxu0 0
      %782 = vmatpush1.bf16.msra.mxu0 %v491
      %783 = vmatprep.subr.bf16.mxu0 0
      %784 = vmatpush1.bf16.msra.mxu0 %v492
      %785 = vmatprep.subr.bf16.mxu0 0
      %786 = vmatpush1.bf16.msra.mxu0 %v493
      %787 = vmatprep.subr.bf16.mxu0 0
      %788 = vmatpush1.bf16.msra.mxu0 %v494
      %789 = vmatprep.subr.bf16.mxu0 0
      %790 = vmatpush1.bf16.msra.mxu0 %v495
      %791 = vmatprep.subr.bf16.mxu0 0
      %792 = vmatpush1.bf16.msra.mxu0 %v496
      %793 = vmatprep.subr.bf16.mxu0 0
      %794 = vmatpush1.bf16.msra.mxu0 %v497
      %795 = vmatprep.subr.bf16.mxu0 0
      %796 = vmatpush1.bf16.msra.mxu0 %v498
      %797 = vmatprep.subr.bf16.mxu0 0
      %798 = vmatpush1.bf16.msra.mxu0 %v499
      %799 = vmatprep.subr.bf16.mxu0 0
      %800 = vmatpush1.bf16.msra.mxu0 %v500
      %801 = vmatprep.subr.bf16.mxu0 0
      %802 = vmatpush1.bf16.msra.mxu0 %v501
      %803 = vmatprep.subr.bf16.mxu0 0
      %804 = vmatpush1.bf16.msra.mxu0 %v502
      %805 = vmatprep.subr.bf16.mxu0 0
      %806 = vmatpush1.bf16.msra.mxu0 %v503
      %807 = vmatprep.subr.bf16.mxu0 0
      %808 = vmatpush1.bf16.msra.mxu0 %v504
      %809 = vmatprep.mubr.bf16.mxu0 %v634
      %810 = vmatmul.mubr.bf16.gmra.mrb[0].mxu0 %v633
      %v811 = vpop.f32.mrb[0].mxu0
      %v812 = vadd.f32 %v700, %v811
      %v813 = vpop.f32.mrb[0].mxu0
      %v814 = vpop.f32.mrb[0].mxu0
      %v815 = vadd.f32 %v705, %v814
      %v816 = vpop.f32.mrb[0].mxu0
      %817 = vmatprep.mubr.bf16.mxu0 %v640
      %818 = vmatmul.mubr.bf16.gmra.mrb[0].mxu0 %v639
      %v819 = vpop.f32.mrb[0].mxu0
      %v820 = vadd.f32 %v710, %v819
      %v821 = vpop.f32.mrb[0].mxu0
      %v822 = vpop.f32.mrb[0].mxu0
      %v823 = vadd.f32 %v715, %v822
      %v824 = vpop.f32.mrb[0].mxu0
      %825 = vmatprep.mubr.bf16.mxu0 %v646
      %826 = vmatmul.mubr.bf16.gmra.mrb[0].mxu0 %v645
      %v827 = vpop.f32.mrb[0].mxu0
      %v828 = vadd.f32 %v720, %v827
      %v829 = vpop.f32.mrb[0].mxu0
      %v830 = vpop.f32.mrb[0].mxu0
      %v831 = vadd.f32 %v725, %v830
      %v832 = vpop.f32.mrb[0].mxu0
      %833 = vmatprep.mubr.bf16.mxu0 %v652
      %834 = vmatmul.mubr.bf16.gmra.mrb[0].mxu0 %v651
      %v835 = vpop.f32.mrb[0].mxu0
      %v836 = vadd.f32 %v730, %v835
      %v837 = vpop.f32.mrb[0].mxu0
      %v838 = vpop.f32.mrb[0].mxu0
      %v839 = vadd.f32 %v735, %v838
      %v840 = vpop.f32.mrb[0].mxu0
      %841 = vmatprep.mubr.bf16.mxu0 %v658
      %842 = vmatmul.mubr.bf16.gmra.mrb[0].mxu0 %v657
      %v843 = vpop.f32.mrb[0].mxu0
      %v844 = vadd.f32 %v740, %v843
      %v845 = vpop.f32.mrb[0].mxu0
      %v846 = vpop.f32.mrb[0].mxu0
      %v847 = vadd.f32 %v745, %v846
      %v848 = vpop.f32.mrb[0].mxu0
      %849 = vmatprep.mubr.bf16.mxu0 %v664
      %850 = vmatmul.mubr.bf16.gmra.mrb[0].mxu0 %v663
      %v851 = vpop.f32.mrb[0].mxu0
      %v852 = vadd.f32 %v750, %v851
      %v853 = vpop.f32.mrb[0].mxu0
      %v854 = vpop.f32.mrb[0].mxu0
      %v855 = vadd.f32 %v755, %v854
      %v856 = vpop.f32.mrb[0].mxu0
      %857 = vmatprep.mubr.bf16.mxu0 %v670
      %858 = vmatmul.mubr.bf16.gmra.mrb[0].mxu0 %v669
      %v859 = vpop.f32.mrb[0].mxu0
      %v860 = vadd.f32 %v760, %v859
      %v861 = vpop.f32.mrb[0].mxu0
      %v862 = vpop.f32.mrb[0].mxu0
      %v863 = vadd.f32 %v765, %v862
      %v864 = vpop.f32.mrb[0].mxu0
      %865 = vmatprep.mubr.bf16.mxu0 %v676
      %866 = vmatmul.mubr.bf16.gmra.mrb[0].mxu0 %v675
      %v867 = vpop.f32.mrb[0].mxu0
      %v868 = vadd.f32 %v770, %v867
      %v869 = vpop.f32.mrb[0].mxu0
      %v870 = vpop.f32.mrb[0].mxu0
      %v871 = vadd.f32 %v775, %v870
      %v872 = vpop.f32.mrb[0].mxu0
      %873 = vdwg.mxu0
      %874 = vmatprep.subr.bf16.mxu0 0
      %875 = vmatpush1.bf16.msra.mxu0 %v505
      %876 = vmatprep.subr.bf16.mxu0 0
      %877 = vmatpush1.bf16.msra.mxu0 %v506
      %878 = vmatprep.subr.bf16.mxu0 0
      %879 = vmatpush1.bf16.msra.mxu0 %v507
      %880 = vmatprep.subr.bf16.mxu0 0
      %881 = vmatpush1.bf16.msra.mxu0 %v508
      %882 = vmatprep.subr.bf16.mxu0 0
      %883 = vmatpush1.bf16.msra.mxu0 %v509
      %884 = vmatprep.subr.bf16.mxu0 0
      %885 = vmatpush1.bf16.msra.mxu0 %v510
      %886 = vmatprep.subr.bf16.mxu0 0
      %887 = vmatpush1.bf16.msra.mxu0 %v511
      %888 = vmatprep.subr.bf16.mxu0 0
      %889 = vmatpush1.bf16.msra.mxu0 %v512
      %890 = vmatprep.subr.bf16.mxu0 0
      %891 = vmatpush1.bf16.msra.mxu0 %v513
      %892 = vmatprep.subr.bf16.mxu0 0
      %893 = vmatpush1.bf16.msra.mxu0 %v514
      %894 = vmatprep.subr.bf16.mxu0 0
      %895 = vmatpush1.bf16.msra.mxu0 %v515
      %896 = vmatprep.subr.bf16.mxu0 0
      %897 = vmatpush1.bf16.msra.mxu0 %v516
      %898 = vmatprep.subr.bf16.mxu0 0
      %899 = vmatpush1.bf16.msra.mxu0 %v517
      %900 = vmatprep.subr.bf16.mxu0 0
      %901 = vmatpush1.bf16.msra.mxu0 %v518
      %902 = vmatprep.subr.bf16.mxu0 0
      %903 = vmatpush1.bf16.msra.mxu0 %v519
      %904 = vmatprep.subr.bf16.mxu0 0
      %905 = vmatpush1.bf16.msra.mxu0 %v520
      %906 = vmatprep.mubr.bf16.mxu0 %v636
      %907 = vmatmul.mubr.bf16.gmra.mrb[0].mxu0 %v635
      %v908 = vpop.f32.mrb[0].mxu0
      %v909 = vadd.f32 %v812, %v908
      %v910 = vpop.f32.mrb[0].mxu0
      %v911 = vpop.f32.mrb[0].mxu0
      %v912 = vadd.f32 %v815, %v911
      %v913 = vpop.f32.mrb[0].mxu0
      %914 = vmatprep.mubr.bf16.mxu0 %v642
      %915 = vmatmul.mubr.bf16.gmra.mrb[0].mxu0 %v641
      %v916 = vpop.f32.mrb[0].mxu0
      %v917 = vadd.f32 %v820, %v916
      %v918 = vpop.f32.mrb[0].mxu0
      %v919 = vpop.f32.mrb[0].mxu0
      %v920 = vadd.f32 %v823, %v919
      %v921 = vpop.f32.mrb[0].mxu0
      %922 = vmatprep.mubr.bf16.mxu0 %v648
      %923 = vmatmul.mubr.bf16.gmra.mrb[0].mxu0 %v647
      %v924 = vpop.f32.mrb[0].mxu0
      %v925 = vadd.f32 %v828, %v924
      %v926 = vpop.f32.mrb[0].mxu0
      %v927 = vpop.f32.mrb[0].mxu0
      %v928 = vadd.f32 %v831, %v927
      %v929 = vpop.f32.mrb[0].mxu0
      %930 = vmatprep.mubr.bf16.mxu0 %v654
      %931 = vmatmul.mubr.bf16.gmra.mrb[0].mxu0 %v653
      %v932 = vpop.f32.mrb[0].mxu0
      %v933 = vadd.f32 %v836, %v932
      %v934 = vpop.f32.mrb[0].mxu0
      %v935 = vpop.f32.mrb[0].mxu0
      %v936 = vadd.f32 %v839, %v935
      %v937 = vpop.f32.mrb[0].mxu0
      %938 = vmatprep.mubr.bf16.mxu0 %v660
      %939 = vmatmul.mubr.bf16.gmra.mrb[0].mxu0 %v659
      %v940 = vpop.f32.mrb[0].mxu0
      %v941 = vadd.f32 %v844, %v940
      %v942 = vpop.f32.mrb[0].mxu0
      %v943 = vpop.f32.mrb[0].mxu0
      %v944 = vadd.f32 %v847, %v943
      %v945 = vpop.f32.mrb[0].mxu0
      %946 = vmatprep.mubr.bf16.mxu0 %v666
      %947 = vmatmul.mubr.bf16.gmra.mrb[0].mxu0 %v665
      %v948 = vpop.f32.mrb[0].mxu0
      %v949 = vadd.f32 %v852, %v948
      %v950 = vpop.f32.mrb[0].mxu0
      %v951 = vpop.f32.mrb[0].mxu0
      %v952 = vadd.f32 %v855, %v951
      %v953 = vpop.f32.mrb[0].mxu0
      %954 = vmatprep.mubr.bf16.mxu0 %v672
      %955 = vmatmul.mubr.bf16.gmra.mrb[0].mxu0 %v671
      %v956 = vpop.f32.mrb[0].mxu0
      %v957 = vadd.f32 %v860, %v956
      %v958 = vpop.f32.mrb[0].mxu0
      %v959 = vpop.f32.mrb[0].mxu0
      %v960 = vadd.f32 %v863, %v959
      %v961 = vpop.f32.mrb[0].mxu0
      %962 = vmatprep.mubr.bf16.mxu0 %v678
      %963 = vmatmul.mubr.bf16.gmra.mrb[0].mxu0 %v677
      %v964 = vpop.f32.mrb[0].mxu0
      %v965 = vadd.f32 %v868, %v964
      %v966 = vpop.f32.mrb[0].mxu0
      %v967 = vpop.f32.mrb[0].mxu0
      %v968 = vadd.f32 %v871, %v967
      %v969 = vpop.f32.mrb[0].mxu0
      %970 = vdwg.mxu0
      %971 = vmatprep.subr.bf16.mxu0 0
      %972 = vmatpush1.bf16.msra.mxu0 %v521
      %973 = vmatprep.subr.bf16.mxu0 0
      %974 = vmatpush1.bf16.msra.mxu0 %v522
      %975 = vmatprep.subr.bf16.mxu0 0
      %976 = vmatpush1.bf16.msra.mxu0 %v523
      %977 = vmatprep.subr.bf16.mxu0 0
      %978 = vmatpush1.bf16.msra.mxu0 %v524
      %979 = vmatprep.subr.bf16.mxu0 0
      %980 = vmatpush1.bf16.msra.mxu0 %v525
      %981 = vmatprep.subr.bf16.mxu0 0
      %982 = vmatpush1.bf16.msra.mxu0 %v526
      %983 = vmatprep.subr.bf16.mxu0 0
      %984 = vmatpush1.bf16.msra.mxu0 %v527
      %985 = vmatprep.subr.bf16.mxu0 0
      %986 = vmatpush1.bf16.msra.mxu0 %v528
      %987 = vmatprep.subr.bf16.mxu0 0
      %988 = vmatpush1.bf16.msra.mxu0 %v529
      %989 = vmatprep.subr.bf16.mxu0 0
      %990 = vmatpush1.bf16.msra.mxu0 %v530
      %991 = vmatprep.subr.bf16.mxu0 0
      %992 = vmatpush1.bf16.msra.mxu0 %v531
      %993 = vmatprep.subr.bf16.mxu0 0
      %994 = vmatpush1.bf16.msra.mxu0 %v532
      %995 = vmatprep.subr.bf16.mxu0 0
      %996 = vmatpush1.bf16.msra.mxu0 %v533
      %997 = vmatprep.subr.bf16.mxu0 0
      %998 = vmatpush1.bf16.msra.mxu0 %v534
      %999 = vmatprep.subr.bf16.mxu0 0
      %1000 = vmatpush1.bf16.msra.mxu0 %v535
      %1001 = vmatprep.subr.bf16.mxu0 0
      %1002 = vmatpush1.bf16.msra.mxu0 %v536
      %1003 = vmatprep.mubr.bf16.mxu0 %v638
      %1004 = vmatmul.mubr.bf16.gmra.mrb[0].mxu0 %v637
      %v1005 = vpop.f32.mrb[0].mxu0
      %v1006 = vadd.f32 %v909, %v1005
      %v1007 = vpop.f32.mrb[0].mxu0
      %v1008 = vpop.f32.mrb[0].mxu0
      %v1009 = vadd.f32 %v912, %v1008
      %v1010 = vpop.f32.mrb[0].mxu0
      %1011 = vmatprep.mubr.bf16.mxu0 %v644
      %1012 = vmatmul.mubr.bf16.gmra.mrb[0].mxu0 %v643
      %v1013 = vpop.f32.mrb[0].mxu0
      %v1014 = vadd.f32 %v917, %v1013
      %v1015 = vpop.f32.mrb[0].mxu0
      %v1016 = vpop.f32.mrb[0].mxu0
      %v1017 = vadd.f32 %v920, %v1016
      %v1018 = vpop.f32.mrb[0].mxu0
      %1019 = vmatprep.mubr.bf16.mxu0 %v650
      %1020 = vmatmul.mubr.bf16.gmra.mrb[0].mxu0 %v649
      %v1021 = vpop.f32.mrb[0].mxu0
      %v1022 = vadd.f32 %v925, %v1021
      %v1023 = vpop.f32.mrb[0].mxu0
      %v1024 = vpop.f32.mrb[0].mxu0
      %v1025 = vadd.f32 %v928, %v1024
      %v1026 = vpop.f32.mrb[0].mxu0
      %1027 = vmatprep.mubr.bf16.mxu0 %v656
      %1028 = vmatmul.mubr.bf16.gmra.mrb[0].mxu0 %v655
      %v1029 = vpop.f32.mrb[0].mxu0
      %v1030 = vadd.f32 %v933, %v1029
      %v1031 = vpop.f32.mrb[0].mxu0
      %v1032 = vpop.f32.mrb[0].mxu0
      %v1033 = vadd.f32 %v936, %v1032
      %v1034 = vpop.f32.mrb[0].mxu0
      %1035 = vmatprep.mubr.bf16.mxu0 %v662
      %1036 = vmatmul.mubr.bf16.gmra.mrb[0].mxu0 %v661
      %v1037 = vpop.f32.mrb[0].mxu0
      %v1038 = vadd.f32 %v941, %v1037
      %v1039 = vpop.f32.mrb[0].mxu0
      %v1040 = vpop.f32.mrb[0].mxu0
      %v1041 = vadd.f32 %v944, %v1040
      %v1042 = vpop.f32.mrb[0].mxu0
      %1043 = vmatprep.mubr.bf16.mxu0 %v668
      %1044 = vmatmul.mubr.bf16.gmra.mrb[0].mxu0 %v667
      %v1045 = vpop.f32.mrb[0].mxu0
      %v1046 = vadd.f32 %v949, %v1045
      %v1047 = vpop.f32.mrb[0].mxu0
      %v1048 = vpop.f32.mrb[0].mxu0
      %v1049 = vadd.f32 %v952, %v1048
      %v1050 = vpop.f32.mrb[0].mxu0
      %1051 = vmatprep.mubr.bf16.mxu0 %v674
      %1052 = vmatmul.mubr.bf16.gmra.mrb[0].mxu0 %v673
      %v1053 = vpop.f32.mrb[0].mxu0
      %v1054 = vadd.f32 %v957, %v1053
      %v1055 = vpop.f32.mrb[0].mxu0
      %v1056 = vpop.f32.mrb[0].mxu0
      %v1057 = vadd.f32 %v960, %v1056
      %v1058 = vpop.f32.mrb[0].mxu0
      %1059 = vmatprep.mubr.bf16.mxu0 %v680
      %1060 = vmatmul.mubr.bf16.gmra.mrb[0].mxu0 %v679
      %v1061 = vpop.f32.mrb[0].mxu0
      %v1062 = vadd.f32 %v965, %v1061
      %v1063 = vpop.f32.mrb[0].mxu0
      %v1064 = vpop.f32.mrb[0].mxu0
      %v1065 = vadd.f32 %v968, %v1064
      %v1066 = vpop.f32.mrb[0].mxu0
      %1067 = vdwg.mxu0
      %v1068 = vmax.f32 %v1006, 0.0
      %v1069 = vmax.f32 %v1009, 0.0
      %v1070 = vmax.f32 %v1014, 0.0
      %v1071 = vmax.f32 %v1017, 0.0
      %v1072 = vmax.f32 %v1022, 0.0
      %v1073 = vmax.f32 %v1025, 0.0
      %v1074 = vmax.f32 %v1030, 0.0
      %v1075 = vmax.f32 %v1033, 0.0
      %v1076 = vmax.f32 %v1038, 0.0
      %v1077 = vmax.f32 %v1041, 0.0
      %v1078 = vmax.f32 %v1046, 0.0
      %v1079 = vmax.f32 %v1049, 0.0
      %v1080 = vmax.f32 %v1054, 0.0
      %v1081 = vmax.f32 %v1057, 0.0
      %v1082 = vmax.f32 %v1062, 0.0
      %v1083 = vmax.f32 %v1065, 0.0
      %v1084 = vld [vmem:[%s371] sm:$0xff]
      %v1085 = vld [vmem:[%s371 + $0x8] sm:$0xff]
      %v1086 = vld [vmem:[%s371 + $0x10] sm:$0xff]
      %v1087 = vld [vmem:[%s371 + $0x18] sm:$0xff]
      %v1088 = vld [vmem:[%s371 + $0x20] sm:$0xff]
      %v1089 = vld [vmem:[%s371 + $0x28] sm:$0xff]
      %v1090 = vld [vmem:[%s371 + $0x30] sm:$0xff]
      %v1091 = vld [vmem:[%s371 + $0x38] sm:$0xff]
      %v1092 = vld [vmem:[%s371 + $0x40] sm:$0xff]
      %v1093 = vld [vmem:[%s371 + $0x48] sm:$0xff]
      %v1094 = vld [vmem:[%s371 + $0x50] sm:$0xff]
      %v1095 = vld [vmem:[%s371 + $0x58] sm:$0xff]
      %v1096 = vld [vmem:[%s371 + $0x60] sm:$0xff]
      %v1097 = vld [vmem:[%s371 + $0x68] sm:$0xff]
      %v1098 = vld [vmem:[%s371 + $0x70] sm:$0xff]
      %v1099 = vld [vmem:[%s371 + $0x78] sm:$0xff]
      %v1100 = vpack.c.bf16 %v1085, %v1084
      %v1101 = vpack.c.bf16 %v1087, %v1086
      %v1102 = vpack.c.bf16 %v1089, %v1088
      %v1103 = vpack.c.bf16 %v1091, %v1090
      %v1104 = vpack.c.bf16 %v1093, %v1092
      %v1105 = vpack.c.bf16 %v1095, %v1094
      %v1106 = vpack.c.bf16 %v1097, %v1096
      %v1107 = vpack.c.bf16 %v1099, %v1098
      %v1108 = vpack.c.bf16 %v1069, %v1068
      %v1109 = vpack.c.bf16 %v1071, %v1070
      %v1110 = vpack.c.bf16 %v1073, %v1072
      %v1111 = vpack.c.bf16 %v1075, %v1074
      %v1112 = vpack.c.bf16 %v1077, %v1076
      %v1113 = vpack.c.bf16 %v1079, %v1078
      %v1114 = vpack.c.bf16 %v1081, %v1080
      %v1115 = vpack.c.bf16 %v1083, %v1082
      %v1116 = vld [vmem:[%s377] sm:$0xff]
      %v1117 = vld [vmem:[%s377 + $0x8] sm:$0xff]
      %v1118 = vld [vmem:[%s377 + $0x10] sm:$0xff]
      %v1119 = vld [vmem:[%s377 + $0x18] sm:$0xff]
      %v1120 = vld [vmem:[%s377 + $0x20] sm:$0xff]
      %v1121 = vld [vmem:[%s377 + $0x28] sm:$0xff]
      %v1122 = vld [vmem:[%s377 + $0x30] sm:$0xff]
      %v1123 = vld [vmem:[%s377 + $0x38] sm:$0xff]
      %v1124 = vld [vmem:[%s377 + $0x40] sm:$0xff]
      %v1125 = vld [vmem:[%s377 + $0x48] sm:$0xff]
      %v1126 = vld [vmem:[%s377 + $0x50] sm:$0xff]
      %v1127 = vld [vmem:[%s377 + $0x58] sm:$0xff]
      %v1128 = vld [vmem:[%s377 + $0x60] sm:$0xff]
      %v1129 = vld [vmem:[%s377 + $0x68] sm:$0xff]
      %v1130 = vld [vmem:[%s377 + $0x70] sm:$0xff]
      %v1131 = vld [vmem:[%s377 + $0x78] sm:$0xff]
      %1133 = vset.pattern.permute.xlu0 0
      %1134 = vperm.xlu0 %1133, %v1116
      %v1135 = vpop.permute.xlu0 %1134
      %1138 = vset.pattern.permute.xlu0 0
      %1139 = vperm.xlu0 %1138, %v1117
      %v1140 = vpop.permute.xlu0 %1139
      %1143 = vset.pattern.permute.xlu0 0
      %1144 = vperm.xlu0 %1143, %v1118
      %v1145 = vpop.permute.xlu0 %1144
      %1148 = vset.pattern.permute.xlu0 0
      %1149 = vperm.xlu0 %1148, %v1119
      %v1150 = vpop.permute.xlu0 %1149
      %1153 = vset.pattern.permute.xlu0 0
      %1154 = vperm.xlu0 %1153, %v1120
      %v1155 = vpop.permute.xlu0 %1154
      %1158 = vset.pattern.permute.xlu0 0
      %1159 = vperm.xlu0 %1158, %v1121
      %v1160 = vpop.permute.xlu0 %1159
      %1163 = vset.pattern.permute.xlu0 0
      %1164 = vperm.xlu0 %1163, %v1122
      %v1165 = vpop.permute.xlu0 %1164
      %1168 = vset.pattern.permute.xlu0 0
      %1169 = vperm.xlu0 %1168, %v1123
      %v1170 = vpop.permute.xlu0 %1169
      %1173 = vset.pattern.permute.xlu0 0
      %1174 = vperm.xlu0 %1173, %v1124
      %v1175 = vpop.permute.xlu0 %1174
      %1178 = vset.pattern.permute.xlu0 0
      %1179 = vperm.xlu0 %1178, %v1125
      %v1180 = vpop.permute.xlu0 %1179
      %1183 = vset.pattern.permute.xlu0 0
      %1184 = vperm.xlu0 %1183, %v1126
      %v1185 = vpop.permute.xlu0 %1184
      %1188 = vset.pattern.permute.xlu0 0
      %1189 = vperm.xlu0 %1188, %v1127
      %v1190 = vpop.permute.xlu0 %1189
      %1193 = vset.pattern.permute.xlu0 0
      %1194 = vperm.xlu0 %1193, %v1128
      %v1195 = vpop.permute.xlu0 %1194
      %1198 = vset.pattern.permute.xlu0 0
      %1199 = vperm.xlu0 %1198, %v1129
      %v1200 = vpop.permute.xlu0 %1199
      %1203 = vset.pattern.permute.xlu0 0
      %1204 = vperm.xlu0 %1203, %v1130
      %v1205 = vpop.permute.xlu0 %1204
      %1208 = vset.pattern.permute.xlu0 0
      %1209 = vperm.xlu0 %1208, %v1131
      %v1210 = vpop.permute.xlu0 %1209
      %1212 = vmatprep.subr.bf16.mxu0 0
      %1213 = vmatpush1.bf16.msra.mxu0 %v1108
      %1214 = vmatprep.subr.bf16.mxu0 0
      %1215 = vmatpush1.bf16.msra.mxu0 %v1109
      %1216 = vmatprep.subr.bf16.mxu0 0
      %1217 = vmatpush1.bf16.msra.mxu0 %v1110
      %1218 = vmatprep.subr.bf16.mxu0 0
      %1219 = vmatpush1.bf16.msra.mxu0 %v1111
      %1220 = vmatprep.subr.bf16.mxu0 0
      %1221 = vmatpush1.bf16.msra.mxu0 %v1112
      %1222 = vmatprep.subr.bf16.mxu0 0
      %1223 = vmatpush1.bf16.msra.mxu0 %v1113
      %1224 = vmatprep.subr.bf16.mxu0 0
      %1225 = vmatpush1.bf16.msra.mxu0 %v1114
      %1226 = vmatprep.subr.bf16.mxu0 0
      %1227 = vmatpush1.bf16.msra.mxu0 %v1115
      %1228 = vmatprep.subr.bf16.mxu0 0
      %1229 = vmatpush1.bf16.msra.mxu0 0
      %1230 = vmatprep.subr.bf16.mxu0 0
      %1231 = vmatpush1.bf16.msra.mxu0 0
      %1232 = vmatprep.subr.bf16.mxu0 0
      %1233 = vmatpush1.bf16.msra.mxu0 0
      %1234 = vmatprep.subr.bf16.mxu0 0
      %1235 = vmatpush1.bf16.msra.mxu0 0
      %1236 = vmatprep.subr.bf16.mxu0 0
      %1237 = vmatpush1.bf16.msra.mxu0 0
      %1238 = vmatprep.subr.bf16.mxu0 0
      %1239 = vmatpush1.bf16.msra.mxu0 0
      %1240 = vmatprep.subr.bf16.mxu0 0
      %1241 = vmatpush1.bf16.msra.mxu0 0
      %1242 = vmatprep.subr.bf16.mxu0 0
      %1243 = vmatpush1.bf16.msra.mxu0 0
      %1244 = vmatprep.mubr.bf16.mxu0 0
      %1245 = vmatmul.mubr.bf16.gmra.mrb[0].mxu0 %v1100
      %v1246 = vpop.f32.mrb[0].mxu0
      %v1247 = vadd.f32 %v1135, %v1246
      %v1248 = vpop.f32.mrb[0].mxu0
      %v1249 = vpop.f32.mrb[0].mxu0
      %v1250 = vadd.f32 %v1140, %v1249
      %v1251 = vpop.f32.mrb[0].mxu0
      %1252 = vmatprep.mubr.bf16.mxu0 0
      %1253 = vmatmul.mubr.bf16.gmra.mrb[0].mxu0 %v1101
      %v1254 = vpop.f32.mrb[0].mxu0
      %v1255 = vadd.f32 %v1145, %v1254
      %v1256 = vpop.f32.mrb[0].mxu0
      %v1257 = vpop.f32.mrb[0].mxu0
      %v1258 = vadd.f32 %v1150, %v1257
      %v1259 = vpop.f32.mrb[0].mxu0
      %1260 = vmatprep.mubr.bf16.mxu0 0
      %1261 = vmatmul.mubr.bf16.gmra.mrb[0].mxu0 %v1102
      %v1262 = vpop.f32.mrb[0].mxu0
      %v1263 = vadd.f32 %v1155, %v1262
      %v1264 = vpop.f32.mrb[0].mxu0
      %v1265 = vpop.f32.mrb[0].mxu0
      %v1266 = vadd.f32 %v1160, %v1265
      %v1267 = vpop.f32.mrb[0].mxu0
      %1268 = vmatprep.mubr.bf16.mxu0 0
      %1269 = vmatmul.mubr.bf16.gmra.mrb[0].mxu0 %v1103
      %v1270 = vpop.f32.mrb[0].mxu0
      %v1271 = vadd.f32 %v1165, %v1270
      %v1272 = vpop.f32.mrb[0].mxu0
      %v1273 = vpop.f32.mrb[0].mxu0
      %v1274 = vadd.f32 %v1170, %v1273
      %v1275 = vpop.f32.mrb[0].mxu0
      %1276 = vmatprep.mubr.bf16.mxu0 0
      %1277 = vmatmul.mubr.bf16.gmra.mrb[0].mxu0 %v1104
      %v1278 = vpop.f32.mrb[0].mxu0
      %v1279 = vadd.f32 %v1175, %v1278
      %v1280 = vpop.f32.mrb[0].mxu0
      %v1281 = vpop.f32.mrb[0].mxu0
      %v1282 = vadd.f32 %v1180, %v1281
      %v1283 = vpop.f32.mrb[0].mxu0
      %1284 = vmatprep.mubr.bf16.mxu0 0
      %1285 = vmatmul.mubr.bf16.gmra.mrb[0].mxu0 %v1105
      %v1286 = vpop.f32.mrb[0].mxu0
      %v1287 = vadd.f32 %v1185, %v1286
      %v1288 = vpop.f32.mrb[0].mxu0
      %v1289 = vpop.f32.mrb[0].mxu0
      %v1290 = vadd.f32 %v1190, %v1289
      %v1291 = vpop.f32.mrb[0].mxu0
      %1292 = vmatprep.mubr.bf16.mxu0 0
      %1293 = vmatmul.mubr.bf16.gmra.mrb[0].mxu0 %v1106
      %v1294 = vpop.f32.mrb[0].mxu0
      %v1295 = vadd.f32 %v1195, %v1294
      %v1296 = vpop.f32.mrb[0].mxu0
      %v1297 = vpop.f32.mrb[0].mxu0
      %v1298 = vadd.f32 %v1200, %v1297
      %v1299 = vpop.f32.mrb[0].mxu0
      %1300 = vmatprep.mubr.bf16.mxu0 0
      %1301 = vmatmul.mubr.bf16.gmra.mrb[0].mxu0 %v1107
      %v1302 = vpop.f32.mrb[0].mxu0
      %v1303 = vadd.f32 %v1205, %v1302
      %v1304 = vpop.f32.mrb[0].mxu0
      %v1305 = vpop.f32.mrb[0].mxu0
      %v1306 = vadd.f32 %v1210, %v1305
      %v1307 = vpop.f32.mrb[0].mxu0
      %1308 = vdwg.mxu0
      %v1309 = vld [vmem:[%s365] sm:$0xff]
      %v1310 = vld [vmem:[%s365 + $0x8] sm:$0xff]
      %v1311 = vld [vmem:[%s365 + $0x10] sm:$0xff]
      %v1312 = vld [vmem:[%s365 + $0x18] sm:$0xff]
      %v1313 = vld [vmem:[%s365 + $0x20] sm:$0xff]
      %v1314 = vld [vmem:[%s365 + $0x28] sm:$0xff]
      %v1315 = vld [vmem:[%s365 + $0x30] sm:$0xff]
      %v1316 = vld [vmem:[%s365 + $0x38] sm:$0xff]
      %v1317 = vld [vmem:[%s365 + $0x40] sm:$0xff]
      %v1318 = vld [vmem:[%s365 + $0x48] sm:$0xff]
      %v1319 = vld [vmem:[%s365 + $0x50] sm:$0xff]
      %v1320 = vld [vmem:[%s365 + $0x58] sm:$0xff]
      %v1321 = vld [vmem:[%s365 + $0x60] sm:$0xff]
      %v1322 = vld [vmem:[%s365 + $0x68] sm:$0xff]
      %v1323 = vld [vmem:[%s365 + $0x70] sm:$0xff]
      %v1324 = vld [vmem:[%s365 + $0x78] sm:$0xff]
      %v1325 = vadd.f32 %v1247, %v1309
      %v1326 = vadd.f32 %v1250, %v1310
      %v1327 = vadd.f32 %v1255, %v1311
      %v1328 = vadd.f32 %v1258, %v1312
      %v1329 = vadd.f32 %v1263, %v1313
      %v1330 = vadd.f32 %v1266, %v1314
      %v1331 = vadd.f32 %v1271, %v1315
      %v1332 = vadd.f32 %v1274, %v1316
      %v1333 = vadd.f32 %v1279, %v1317
      %v1334 = vadd.f32 %v1282, %v1318
      %v1335 = vadd.f32 %v1287, %v1319
      %v1336 = vadd.f32 %v1290, %v1320
      %v1337 = vadd.f32 %v1295, %v1321
      %v1338 = vadd.f32 %v1298, %v1322
      %v1339 = vadd.f32 %v1303, %v1323
      %v1340 = vadd.f32 %v1306, %v1324
      %1341 = vst [vmem:[%s390] sm:$0xff] %v1325
      %1342 = vst [vmem:[%s390 + $0x8] sm:$0xff] %v1326
      %1343 = vst [vmem:[%s390 + $0x10] sm:$0xff] %v1327
      %1344 = vst [vmem:[%s390 + $0x18] sm:$0xff] %v1328
      %1345 = vst [vmem:[%s390 + $0x20] sm:$0xff] %v1329
      %1346 = vst [vmem:[%s390 + $0x28] sm:$0xff] %v1330
      %1347 = vst [vmem:[%s390 + $0x30] sm:$0xff] %v1331
      %1348 = vst [vmem:[%s390 + $0x38] sm:$0xff] %v1332
      %1349 = vst [vmem:[%s390 + $0x40] sm:$0xff] %v1333
      %1350 = vst [vmem:[%s390 + $0x48] sm:$0xff] %v1334
      %1351 = vst [vmem:[%s390 + $0x50] sm:$0xff] %v1335
      %1352 = vst [vmem:[%s390 + $0x58] sm:$0xff] %v1336
      %1353 = vst [vmem:[%s390 + $0x60] sm:$0xff] %v1337
      %1354 = vst [vmem:[%s390 + $0x68] sm:$0xff] %v1338
      %1355 = vst [vmem:[%s390 + $0x70] sm:$0xff] %v1339
      %1356 = vst [vmem:[%s390 + $0x78] sm:$0xff] %v1340
      %s1357 = smul.u32 16, %s23
      %p1358 = scmp.lt.s32.totalorder %s22, 0
      %s1359 = scalar_select %p1358, %s22, 0
      %p1360 = scmp.lt.s32.totalorder %s1357, 31
      %s1361 = scalar_select %p1360, %s1357, 31
      %p1362 = scmp.lt.s32.totalorder %s24, 0
      %s1363 = scalar_select %p1362, %s24, 0
      %s1364 = sadd.s32 %s1363, %s1361
      %s1365 = smul.addr %s1359, 32
      %s1366 = sadd.s32 %s1364, %s1365
      %s1367 = smul.addr %s1366, 8
      %s1368 = scalar_lea.vmem %s6, %s1367
      // Predicated region
      $region45: #{update_resnet256.1} parent=43 // pred_check
        %p1369 = pneg %p210
      $region46: #{update_resnet256.1} parent=43 // pred_check_branch
        %1371 = sbr.rel (%p1369) target = $region48
      $region47: #{update_resnet256.1} parent=43 // pred_region
        %s1372 = smul.u32 16, %s23
      $region48: #{update_resnet256.1} parent=43 // pred_fallthru
        _
    $region44: #{update_resnet256.1} parent=5 // pred_fallthru
      _
    %p1373 = scmp.le.s32.totalorder 2, %s12
    // Predicated region
    $region49: #{update_resnet256.1} parent=5 // pred_check
      %p1374 = pneg %p1373
    $region50: #{update_resnet256.1} parent=5 // pred_check_branch
      %1376 = sbr.rel (%p1374) target = $region52
    $region51: #{update_resnet256.1} parent=5 // pred_region
      %s1377 = ssub.s32 %s12, 2
      // Predicated region
      $region53: #{update_resnet256.1} parent=51 // pred_check
        %p1378 = pneg %p216
      $region54: #{update_resnet256.1} parent=51 // pred_check_branch
        %1380 = sbr.rel (%p1378) target = $region56
      $region55: #{update_resnet256.1} parent=51 // pred_region
        %s1381 = smul.u32 16, %s26
        %p1382 = scmp.lt.s32.totalorder %s25, 0
        %s1383 = scalar_select %p1382, %s25, 0
        %p1384 = scmp.lt.s32.totalorder %s1381, 31
        %s1385 = scalar_select %p1384, %s1381, 31
        %p1386 = scmp.lt.s32.totalorder %s27, 0
        %s1387 = scalar_select %p1386, %s27, 0
        %s1388 = sadd.s32 %s1387, %s1385
        %s1389 = smul.addr %s1383, 32
        %s1390 = sadd.s32 %s1388, %s1389
        %s1391 = smul.addr %s1390, 8
        %s1392 = scalar_lea.vmem %s6, %s1391
      $region56: #{update_resnet256.1} parent=51 // pred_fallthru
        _
    $region52: #{update_resnet256.1} parent=5 // pred_fallthru
      _
  $region6: #{update_resnet256.1} parent=0 // loop_footer
    %s16 = sadd.s32 1, %s12
  $region7: #{update_resnet256.1} parent=0 // loop_footer_branch
    %11 = sbr.rel target = $region3
  $region8: #{update_resnet256.1} parent=0 // loop_exit
    _

</llo_original>
